<compile_context>
chip_gen: v7x
topology: tpu7x:2x2x1
jax: 0.10.0
libtpu: 0.0.40
codegen_flags: <defaults>
</compile_context>

<pallas_src>
import math

import jax
import jax.numpy as jnp
import numpy as np
from jax import lax
from jax.experimental import pallas as pl
from jax.experimental.pallas import tpu as pltpu

PART = 6  # self.part = 6


def _cdiv(a: int, b: int) -> int:
    return -(-a // b)


def _round_up(a: int, b: int) -> int:
    return _cdiv(a, b) * b


def _adaptive_bins(in_size: int, out_size: int):
    """PyTorch AdaptiveAvgPool bin boundaries: [floor(i*I/O), ceil((i+1)*I/O))."""
    bins = []
    for i in range(out_size):
        start = (i * in_size) // out_size
        end = -((-(i + 1) * in_size) // out_size)  # ceil((i+1)*in/out)
        bins.append((start, end))
    return bins


def _fold_factor(HW: int, ROWS: int) -> int:
    """How many consecutive (b,c) rows to fold into the lane dimension."""
    k = 128 // math.gcd(HW, 128)
    if k == 1:
        return 1
    if ROWS % k != 0:
        # TODO(synk): could pad ROWS to a multiple of k, but that costs an extra
        # HBM pass; fall back to the unfolded layout instead.
        return 1
    # Keep the (mostly-zero) block-diagonal weight matrix small.
    if k * HW * k * PART * 4 > (2 << 20):
        return 1
    return k


def _pool_weights(H: int, W: int, k: int, dtype) -> jax.Array:
    """(k*H*W, k*PART) block-diagonal averaging matrix (adaptive bins baked in)."""
    HW = H * W
    base = np.zeros((HW, PART), dtype=np.float32)
    for p, (s, e) in enumerate(_adaptive_bins(H, PART)):
        base[s * W:e * W, p] = 1.0 / float((e - s) * W)
    if k == 1:
        wb = base
    else:
        wb = np.zeros((k * HW, k * PART), dtype=np.float32)
        for j in range(k):
            wb[j * HW:(j + 1) * HW, j * PART:(j + 1) * PART] = base
    return jnp.asarray(wb, dtype=dtype)


def _min_grid_steps() -> int:
    """>=4 grid steps only on dual-TensorCore chips (v7x); 2 elsewhere."""
    try:
        kind = jax.devices()[0].device_kind.lower()
    except Exception:
        return 2
    if "v7" in kind or "tpu7" in kind or "7x" in kind:
        return 4
    return 2


def _make_kernel(chunk_rows: int, n_chunks: int, cast_to_f32: bool):
    def kernel(x_ref, w_ref, o_ref):
        # x_ref: (rows_tile, k*HW)   VMEM tile (rows = groups of k (b,c) pairs)
        # w_ref: (k*HW, k*PART)      block-diagonal averaging matrix
        # o_ref: (rows_tile, k*PART)
        w = w_ref[...]  # small

        def do_chunk(start):
            xs = x_ref[pl.ds(start, chunk_rows), :]
            if cast_to_f32:
                xs = xs.astype(jnp.float32)
            o_ref[pl.ds(start, chunk_rows), :] = jnp.dot(
                xs, w, preferred_element_type=jnp.float32
            ).astype(o_ref.dtype)

        if n_chunks == 1:
            do_chunk(0)
        else:
            unroll = True if n_chunks <= 8 else 4

            def body(c, carry):
                do_chunk(pl.multiple_of(c * chunk_rows, chunk_rows))
                return carry

            lax.fori_loop(0, n_chunks, body, None, unroll=unroll)

    return kernel


def pcb_dense_test_forward(feat_nchw: jax.Array) -> jax.Array:
    """feat_nchw: (B, C, H, W) backbone feature map.

    Returns y: (B, C, PART), matching AdaptiveAvgPool2d((6, 1))(feat).view(B, C, 6).
    """
    B, C, H, W = feat_nchw.shape
    HW = H * W
    ROWS = B * C
    dtype = jnp.dtype(feat_nchw.dtype)
    itemsize = dtype.itemsize

    # --- lane folding (free reshape of the contiguous NCHW tensor) ----------------
    k = _fold_factor(HW, ROWS)
    ROWS_G = ROWS // k            # grouped rows
    LANES = k * HW                # lane width of one grouped row
    OUT_LANES = k * PART
    x2d = feat_nchw.reshape(ROWS_G, LANES)

    # Weights: native bf16 for bf16 features (MXU-native, f32 accumulation), f32 else.
    w_dtype = jnp.bfloat16 if dtype == jnp.dtype(jnp.bfloat16) else jnp.float32
    w = _pool_weights(H, W, k, w_dtype)
    cast_to_f32 = dtype not in (jnp.dtype(jnp.float32), jnp.dtype(jnp.bfloat16))

    # --- chunk sizing (vreg budget for the streamed LHS chunk) ---------------------
    lanes_pad = _round_up(LANES, 128)         # == LANES whenever folding applied
    lane_tiles = lanes_pad // 128
    sub_pack = 2 if dtype == jnp.dtype(jnp.bfloat16) else 1
    vreg_budget = 24
    chunk_rows = max(16, (max(1, vreg_budget // lane_tiles)) * 8 * sub_pack)
    chunk_rows = max(16, (chunk_rows // 16) * 16)   # multiple of 16 (bf16 sublane pack)

    # --- tile sizing against the *padded* VMEM footprint ---------------------------
    in_row_bytes = lanes_pad * itemsize
    tile_target = 8 << 20                     # ~8 MiB input tile (double buffered)
    n_by_vmem = max(1, tile_target // max(1, in_row_bytes * chunk_rows))
    min_steps = _min_grid_steps()
    n_by_rows = max(1, _cdiv(_cdiv(ROWS_G, min_steps), chunk_rows))
    n_chunks = max(1, min(n_by_vmem, n_by_rows, _cdiv(ROWS_G, chunk_rows)))
    rows_tile = n_chunks * chunk_rows

    if rows_tile > ROWS_G:
        if ROWS_G >= chunk_rows:
            n_chunks = ROWS_G // chunk_rows
            rows_tile = n_chunks * chunk_rows          # last grid tile is partial
        else:
            n_chunks = 1
            chunk_rows = ROWS_G                        # full-dim block (always legal)
            rows_tile = ROWS_G

    grid = (_cdiv(ROWS_G, rows_tile),)

    # --- explicit VMEM limit: 2x input tile + 2x output tile + 2x weight + slack ---
    out_row_bytes = _round_up(OUT_LANES, 128) * itemsize
    w_bytes = _round_up(LANES, 8) * _round_up(OUT_LANES, 128) * jnp.dtype(w_dtype).itemsize
    vmem_need = 2 * rows_tile * in_row_bytes + 2 * rows_tile * out_row_bytes \
        + 2 * w_bytes + (2 << 20)
    vmem_limit = int(min(max(vmem_need, 16 << 20), 40 << 20))

    cost = pl.CostEstimate(
        flops=2 * ROWS * HW * PART,
        transcendentals=0,
        bytes_accessed=ROWS * HW * itemsize + ROWS * PART * itemsize + int(w.size) * jnp.dtype(w_dtype).itemsize,
    )

    out2d = pl.pallas_call(
        _make_kernel(chunk_rows, n_chunks, cast_to_f32),
        out_shape=jax.ShapeDtypeStruct((ROWS_G, OUT_LANES), feat_nchw.dtype),
        grid=grid,
        in_specs=[
            pl.BlockSpec((rows_tile, LANES), lambda i: (i, 0)),
            pl.BlockSpec((LANES, OUT_LANES), lambda i: (0, 0)),
        ],
        out_specs=pl.BlockSpec((rows_tile, OUT_LANES), lambda i: (i, 0)),
        compiler_params=pltpu.CompilerParams(
            dimension_semantics=("parallel",),
            vmem_limit_bytes=vmem_limit,
        ),
        cost_estimate=cost,
    )(x2d, w)

    # Free reshapes: (ROWS/k, k*PART) -> (ROWS, PART) -> (B, C, PART) == x.view(B, C, 6).
    return out2d.reshape(ROWS, PART).reshape(B, C, PART)


def _reference(feat_nchw: jax.Array) -> jax.Array:
    """Pure-JAX reference of AdaptiveAvgPool2d((6, 1)) + view."""
    parts = []
    for (s, e) in _adaptive_bins(feat_nchw.shape[2], PART):
        parts.append(jnp.mean(feat_nchw[:, :, s:e, :], axis=(2, 3)))  # (B, C)
    return jnp.stack(parts, axis=-1)  # (B, C, PART)


if __name__ == "__main__":
    key = jax.random.PRNGKey(0)
    # Small synthetic "backbone feature map": DenseNet-like C=1024, spatial 12 x 4.
    # HW=48 -> k=8 lane fold, (k*HW)=384 lanes; exercises multi-step grid + chunk loop.
    B, C, H, W = 8, 1024, 12, 4
    x = jax.random.normal(key, (B, C, H, W), dtype=jnp.float32)

    y = pcb_dense_test_forward(x)
    y = jax.block_until_ready(y)

    y_ref = _reference(x)
    assert y.shape == (B, C, PART), y.shape
    assert jnp.allclose(y, y_ref, atol=2e-5, rtol=2e-5), "mismatch vs reference"

    print("KERNEL_OK")
</pallas_src>

<mosaic_0001>
module attributes {stable_mosaic.version = 11 : i64} {
  func.func @kernel(%arg0: i32, %arg1: memref<512x384xf32, #tpu.memory_space<vmem>>, %arg2: memref<384x48xf32, #tpu.memory_space<vmem>>, %arg3: memref<512x48xf32, #tpu.memory_space<vmem>>) attributes {dimension_semantics = [#tpu.dimension_semantics<parallel>], iteration_bounds = array<i64: 2>, scalar_prefetch = 0 : i64, scratch_operands = 0 : i64, tpu.core_type = #tpu.core_type<tc>, window_params = [{transform_indices = @transform_0, window_bounds = array<i64: 512, 384>}, {pipeline_mode = #tpu.pipeline_mode<synchronous>, transform_indices = @transform_1, window_bounds = array<i64: 384, 48>}, {transform_indices = @transform_2, window_bounds = array<i64: 512, 48>}]} {
    %c0 = arith.constant 0 : index
    %c0_0 = arith.constant 0 : index
    %0 = vector.load %arg2[%c0, %c0_0] : memref<384x48xf32, #tpu.memory_space<vmem>>, vector<384x48xf32>
    %c0_i32 = arith.constant 0 : i32
    %c64_i32 = arith.constant 64 : i32
    %1 = arith.muli %c0_i32, %c64_i32 : i32
    %2 = tpu.assume_multiple %1, 64 : i32
    %3 = arith.index_cast %2 : i32 to index
    %c0_1 = arith.constant 0 : index
    %4 = vector.load %arg1[%3, %c0_1] : memref<512x384xf32, #tpu.memory_space<vmem>>, vector<64x384xf32>
    %cst = arith.constant dense<0.000000e+00> : vector<64x48xf32>
    %5 = tpu.matmul %4, %0, %cst {dimension_numbers = #tpu.dot_dimension_numbers<[1], [0], [0], [1], [0, 0, 1, 1], [], []>} : vector<64x384xf32>, vector<384x48xf32>, vector<64x48xf32> -> vector<64x48xf32>
    %6 = arith.index_cast %2 : i32 to index
    %c0_2 = arith.constant 0 : index
    %7 = vector.load %arg3[%6, %c0_2] : memref<512x48xf32, #tpu.memory_space<vmem>>, vector<64x48xf32>
    tpu.vector_store %arg3[%6, %c0_2], %5 {strides = array<i32>} : memref<512x48xf32, #tpu.memory_space<vmem>>, vector<64x48xf32>,
    %c1_i32 = arith.constant 1 : i32
    %c64_i32_3 = arith.constant 64 : i32
    %8 = arith.muli %c1_i32, %c64_i32_3 : i32
    %9 = tpu.assume_multiple %8, 64 : i32
    %10 = arith.index_cast %9 : i32 to index
    %c0_4 = arith.constant 0 : index
    %11 = vector.load %arg1[%10, %c0_4] : memref<512x384xf32, #tpu.memory_space<vmem>>, vector<64x384xf32>
    %cst_5 = arith.constant dense<0.000000e+00> : vector<64x48xf32>
    %12 = tpu.matmul %11, %0, %cst_5 {dimension_numbers = #tpu.dot_dimension_numbers<[1], [0], [0], [1], [0, 0, 1, 1], [], []>} : vector<64x384xf32>, vector<384x48xf32>, vector<64x48xf32> -> vector<64x48xf32>
    %13 = arith.index_cast %9 : i32 to index
    %c0_6 = arith.constant 0 : index
    %14 = vector.load %arg3[%13, %c0_6] : memref<512x48xf32, #tpu.memory_space<vmem>>, vector<64x48xf32>
    tpu.vector_store %arg3[%13, %c0_6], %12 {strides = array<i32>} : memref<512x48xf32, #tpu.memory_space<vmem>>, vector<64x48xf32>,
    %c2_i32 = arith.constant 2 : i32
    %c64_i32_7 = arith.constant 64 : i32
    %15 = arith.muli %c2_i32, %c64_i32_7 : i32
    %16 = tpu.assume_multiple %15, 64 : i32
    %17 = arith.index_cast %16 : i32 to index
    %c0_8 = arith.constant 0 : index
    %18 = vector.load %arg1[%17, %c0_8] : memref<512x384xf32, #tpu.memory_space<vmem>>, vector<64x384xf32>
    %cst_9 = arith.constant dense<0.000000e+00> : vector<64x48xf32>
    %19 = tpu.matmul %18, %0, %cst_9 {dimension_numbers = #tpu.dot_dimension_numbers<[1], [0], [0], [1], [0, 0, 1, 1], [], []>} : vector<64x384xf32>, vector<384x48xf32>, vector<64x48xf32> -> vector<64x48xf32>
    %20 = arith.index_cast %16 : i32 to index
    %c0_10 = arith.constant 0 : index
    %21 = vector.load %arg3[%20, %c0_10] : memref<512x48xf32, #tpu.memory_space<vmem>>, vector<64x48xf32>
    tpu.vector_store %arg3[%20, %c0_10], %19 {strides = array<i32>} : memref<512x48xf32, #tpu.memory_space<vmem>>, vector<64x48xf32>,
    %c3_i32 = arith.constant 3 : i32
    %c64_i32_11 = arith.constant 64 : i32
    %22 = arith.muli %c3_i32, %c64_i32_11 : i32
    %23 = tpu.assume_multiple %22, 64 : i32
    %24 = arith.index_cast %23 : i32 to index
    %c0_12 = arith.constant 0 : index
    %25 = vector.load %arg1[%24, %c0_12] : memref<512x384xf32, #tpu.memory_space<vmem>>, vector<64x384xf32>
    %cst_13 = arith.constant dense<0.000000e+00> : vector<64x48xf32>
    %26 = tpu.matmul %25, %0, %cst_13 {dimension_numbers = #tpu.dot_dimension_numbers<[1], [0], [0], [1], [0, 0, 1, 1], [], []>} : vector<64x384xf32>, vector<384x48xf32>, vector<64x48xf32> -> vector<64x48xf32>
    %27 = arith.index_cast %23 : i32 to index
    %c0_14 = arith.constant 0 : index
    %28 = vector.load %arg3[%27, %c0_14] : memref<512x48xf32, #tpu.memory_space<vmem>>, vector<64x48xf32>
    tpu.vector_store %arg3[%27, %c0_14], %26 {strides = array<i32>} : memref<512x48xf32, #tpu.memory_space<vmem>>, vector<64x48xf32>,
    %c4_i32 = arith.constant 4 : i32
    %c64_i32_15 = arith.constant 64 : i32
    %29 = arith.muli %c4_i32, %c64_i32_15 : i32
    %30 = tpu.assume_multiple %29, 64 : i32
    %31 = arith.index_cast %30 : i32 to index
    %c0_16 = arith.constant 0 : index
    %32 = vector.load %arg1[%31, %c0_16] : memref<512x384xf32, #tpu.memory_space<vmem>>, vector<64x384xf32>
    %cst_17 = arith.constant dense<0.000000e+00> : vector<64x48xf32>
    %33 = tpu.matmul %32, %0, %cst_17 {dimension_numbers = #tpu.dot_dimension_numbers<[1], [0], [0], [1], [0, 0, 1, 1], [], []>} : vector<64x384xf32>, vector<384x48xf32>, vector<64x48xf32> -> vector<64x48xf32>
    %34 = arith.index_cast %30 : i32 to index
    %c0_18 = arith.constant 0 : index
    %35 = vector.load %arg3[%34, %c0_18] : memref<512x48xf32, #tpu.memory_space<vmem>>, vector<64x48xf32>
    tpu.vector_store %arg3[%34, %c0_18], %33 {strides = array<i32>} : memref<512x48xf32, #tpu.memory_space<vmem>>, vector<64x48xf32>,
    %c5_i32 = arith.constant 5 : i32
    %c64_i32_19 = arith.constant 64 : i32
    %36 = arith.muli %c5_i32, %c64_i32_19 : i32
    %37 = tpu.assume_multiple %36, 64 : i32
    %38 = arith.index_cast %37 : i32 to index
    %c0_20 = arith.constant 0 : index
    %39 = vector.load %arg1[%38, %c0_20] : memref<512x384xf32, #tpu.memory_space<vmem>>, vector<64x384xf32>
    %cst_21 = arith.constant dense<0.000000e+00> : vector<64x48xf32>
    %40 = tpu.matmul %39, %0, %cst_21 {dimension_numbers = #tpu.dot_dimension_numbers<[1], [0], [0], [1], [0, 0, 1, 1], [], []>} : vector<64x384xf32>, vector<384x48xf32>, vector<64x48xf32> -> vector<64x48xf32>
    %41 = arith.index_cast %37 : i32 to index
    %c0_22 = arith.constant 0 : index
    %42 = vector.load %arg3[%41, %c0_22] : memref<512x48xf32, #tpu.memory_space<vmem>>, vector<64x48xf32>
    tpu.vector_store %arg3[%41, %c0_22], %40 {strides = array<i32>} : memref<512x48xf32, #tpu.memory_space<vmem>>, vector<64x48xf32>,
    %c6_i32 = arith.constant 6 : i32
    %c64_i32_23 = arith.constant 64 : i32
    %43 = arith.muli %c6_i32, %c64_i32_23 : i32
    %44 = tpu.assume_multiple %43, 64 : i32
    %45 = arith.index_cast %44 : i32 to index
    %c0_24 = arith.constant 0 : index
    %46 = vector.load %arg1[%45, %c0_24] : memref<512x384xf32, #tpu.memory_space<vmem>>, vector<64x384xf32>
    %cst_25 = arith.constant dense<0.000000e+00> : vector<64x48xf32>
    %47 = tpu.matmul %46, %0, %cst_25 {dimension_numbers = #tpu.dot_dimension_numbers<[1], [0], [0], [1], [0, 0, 1, 1], [], []>} : vector<64x384xf32>, vector<384x48xf32>, vector<64x48xf32> -> vector<64x48xf32>
    %48 = arith.index_cast %44 : i32 to index
    %c0_26 = arith.constant 0 : index
    %49 = vector.load %arg3[%48, %c0_26] : memref<512x48xf32, #tpu.memory_space<vmem>>, vector<64x48xf32>
    tpu.vector_store %arg3[%48, %c0_26], %47 {strides = array<i32>} : memref<512x48xf32, #tpu.memory_space<vmem>>, vector<64x48xf32>,
    %c7_i32 = arith.constant 7 : i32
    %c64_i32_27 = arith.constant 64 : i32
    %50 = arith.muli %c7_i32, %c64_i32_27 : i32
    %51 = tpu.assume_multiple %50, 64 : i32
    %52 = arith.index_cast %51 : i32 to index
    %c0_28 = arith.constant 0 : index
    %53 = vector.load %arg1[%52, %c0_28] : memref<512x384xf32, #tpu.memory_space<vmem>>, vector<64x384xf32>
    %cst_29 = arith.constant dense<0.000000e+00> : vector<64x48xf32>
    %54 = tpu.matmul %53, %0, %cst_29 {dimension_numbers = #tpu.dot_dimension_numbers<[1], [0], [0], [1], [0, 0, 1, 1], [], []>} : vector<64x384xf32>, vector<384x48xf32>, vector<64x48xf32> -> vector<64x48xf32>
    %55 = arith.index_cast %51 : i32 to index
    %c0_30 = arith.constant 0 : index
    %56 = vector.load %arg3[%55, %c0_30] : memref<512x48xf32, #tpu.memory_space<vmem>>, vector<64x48xf32>
    tpu.vector_store %arg3[%55, %c0_30], %54 {strides = array<i32>} : memref<512x48xf32, #tpu.memory_space<vmem>>, vector<64x48xf32>,
    %c8_i32 = arith.constant 8 : i32
    return
  }
  func.func @transform_0(%arg0: i32) -> (i32, i32) {
    %c0_i32 = arith.constant 0 : i32
    %c0_i32_0 = arith.constant 0 : i32
    return %arg0, %c0_i32 : i32, i32
  }
  func.func @transform_1(%arg0: i32) -> (i32, i32) {
    %c0_i32 = arith.constant 0 : i32
    %c0_i32_0 = arith.constant 0 : i32
    %c0_i32_1 = arith.constant 0 : i32
    return %c0_i32, %c0_i32_0 : i32, i32
  }
  func.func @transform_2(%arg0: i32) -> (i32, i32) {
    %c0_i32 = arith.constant 0 : i32
    %c0_i32_0 = arith.constant 0 : i32
    return %arg0, %c0_i32 : i32, i32
  }
}

</mosaic_0001>

<llo_original>
// kernel: tpu_custom_call.1
$region0: #{tpu_custom_call.1}
  #allocation0 [shape = 'u32[]', space=smem, size = 0x4, offset = 0x4, fixed_abs, tag = 'smem constant byte address 0x4 - core index']
  #allocation1 [shape = 'u32[144,128]{1,0:T(1,128)}', space=vmem, size = 0x12000, scoped, tag = 'internal scratch']
  %s0 = inlined_call_operand.hbm [shape: f32[1024,384], index: 0, kind: input, shape index: {}]
  %s1 = inlined_call_operand.vmem [shape: f32[384,48], index: 1, kind: input, shape index: {}]
  %s2 = inlined_call_operand.vmem [shape: f32[1024,48], index: 2, kind: output, shape index: {}]
  %s3 = sld [smem:[#allocation0]]
  $region45: #{tpu_custom_call.1} parent=0
    _
  %s5 = ssub.s32 1, %s3
  %s6 = scalar_select 0, %s5, %s3
  $region1: #{tpu_custom_call.1} parent=0
    #allocation2 [shape = 'u8[1572864]{0}', space=vmem, size = 0x180000, scoped, tag = 'input window, operand 0']
    #allocation3 [shape = 's32[2]{0}', space=sflag, size = 0x8, scoped, tag = 'scoped memory for tpu_custom_call.1']
    %7 = vsyncpa [#allocation3], 0
    %s8 = scalar_lea.sflag [#allocation3], 1
    %9 = vsyncpa %s8, 0
    loop: start=0, step=1, limit=4
    $region2: #{tpu_custom_call.1} parent=1 // loop_pre_header
      _
    $region3: #{tpu_custom_call.1} parent=1 // loop_header
      %s11 = sphi 0, %s15
      %p12 = scmp.ge.s32.totalorder %s11, 4
      %s21 = sphi 0, %s23
      %s24 = sphi 0, %s21
      %s25 = sphi 0, %s24
      %s41 = sphi 0, %s25
      %s45 = sphi 0, %s45
      %s47 = sphi 0, %s45
      %s48 = sphi 0, %s47
      %s62 = sphi 0, %s48
      %s68 = sphi 0, %s70
      %s71 = sphi 0, %s68
      %s72 = sphi 0, %s71
      %s88 = sphi 0, %s72
    $region4: #{tpu_custom_call.1} parent=1 // loop_header_branch
      %14 = sbr.rel (%p12) target = $region8
    $region5: #{tpu_custom_call.1} parent=1 // loop_body
      %s16 = ssub.s32 %s11, 1
      %s17 = ssub.s32 %s11, 2
      %s18 = sadd.s32 %s11, 1
      %s19 = ssub.s32 %s11, %s18
      %p20 = scmp.eq.s32.totalorder %s19, 0
      %s22 = sadd.s32 %s21, 1
      %s23 = scalar_select %p20, %s21, %s22
      %p26 = pneg %p20
      %p27 = scmp.eq.s32.totalorder %s11, 1
      %p28 = por %p26, %p27
      %p29 = scmp.ne.s32.totalorder %s21, %s24
      %p30 = scmp.eq.s32.totalorder %s11, 0
      %p31 = por %p29, %p30
      %p32 = scmp.ne.s32.totalorder %s21, %s24
      %p33 = scmp.eq.s32.totalorder %s16, 1
      %p34 = por %p32, %p33
      %p35 = scmp.ne.s32.totalorder %s24, %s25
      %p36 = scmp.eq.s32.totalorder %s16, 0
      %p37 = por %p35, %p36
      %p38 = scmp.ne.s32.totalorder %s24, %s25
      %p39 = scmp.eq.s32.totalorder %s17, 1
      %p40 = por %p38, %p39
      %p42 = scmp.ne.s32.totalorder %s25, %s41
      %p43 = scmp.eq.s32.totalorder %s17, 0
      %p44 = por %p42, %p43
      %s46 = sadd.s32 %s45, 1
      %p49 = scmp.eq.s32.totalorder %s11, 1
      %p50 = scmp.ne.s32.totalorder %s45, %s47
      %p51 = scmp.eq.s32.totalorder %s11, 0
      %p52 = por %p50, %p51
      %p53 = scmp.ne.s32.totalorder %s45, %s47
      %p54 = scmp.eq.s32.totalorder %s16, 1
      %p55 = por %p53, %p54
      %p56 = scmp.ne.s32.totalorder %s47, %s48
      %p57 = scmp.eq.s32.totalorder %s16, 0
      %p58 = por %p56, %p57
      %p59 = scmp.ne.s32.totalorder %s47, %s48
      %p60 = scmp.eq.s32.totalorder %s17, 1
      %p61 = por %p59, %p60
      %p63 = scmp.ne.s32.totalorder %s48, %s62
      %p64 = scmp.eq.s32.totalorder %s17, 0
      %p65 = por %p63, %p64
      %s66 = ssub.s32 %s11, %s18
      %p67 = scmp.eq.s32.totalorder %s66, 0
      %s69 = sadd.s32 %s68, 1
      %s70 = scalar_select %p67, %s68, %s69
      %p73 = pneg %p67
      %p74 = scmp.eq.s32.totalorder %s11, 1
      %p75 = por %p73, %p74
      %p76 = scmp.ne.s32.totalorder %s68, %s71
      %p77 = scmp.eq.s32.totalorder %s11, 0
      %p78 = por %p76, %p77
      %p79 = scmp.ne.s32.totalorder %s68, %s71
      %p80 = scmp.eq.s32.totalorder %s16, 1
      %p81 = por %p79, %p80
      %p82 = scmp.ne.s32.totalorder %s71, %s72
      %p83 = scmp.eq.s32.totalorder %s16, 0
      %p84 = por %p82, %p83
      %p85 = scmp.ne.s32.totalorder %s71, %s72
      %p86 = scmp.eq.s32.totalorder %s17, 1
      %p87 = por %p85, %p86
      %p89 = scmp.ne.s32.totalorder %s72, %s88
      %p90 = scmp.eq.s32.totalorder %s17, 0
      %p91 = por %p89, %p90
      %p92 = scmp.le.s32.totalorder 1, %s11
      %p93 = scmp.lt.s32.totalorder %s11, 3
      %p94 = pnand %p92, %p93
      %p95 = pneg %p94
      // Predicated region
      $region9: #{tpu_custom_call.1} parent=5 // pred_check
        _
      $region10: #{tpu_custom_call.1} parent=5 // pred_check_branch
        %97 = sbr.rel (%p94) target = $region12
      $region11: #{tpu_custom_call.1} parent=5 // pred_region
        %s98 = ssub.s32 %s11, 1
        // Predicated region
        $region13: #{tpu_custom_call.1} parent=11 // pred_check
          %p99 = pneg %p58
        $region14: #{tpu_custom_call.1} parent=11 // pred_check_branch
          %101 = sbr.rel (%p99) target = $region16
        $region15: #{tpu_custom_call.1} parent=11 // pred_region
          _
        $region16: #{tpu_custom_call.1} parent=11 // pred_fallthru
          _
      $region12: #{tpu_custom_call.1} parent=5 // pred_fallthru
        _
      %p102 = scmp.lt.s32.totalorder %s11, 2
      // Predicated region
      $region17: #{tpu_custom_call.1} parent=5 // pred_check
        %p103 = pneg %p102
      $region18: #{tpu_custom_call.1} parent=5 // pred_check_branch
        %105 = sbr.rel (%p103) target = $region20
      $region19: #{tpu_custom_call.1} parent=5 // pred_region
        // Predicated region
        $region21: #{tpu_custom_call.1} parent=19 // pred_check
          %p106 = pneg %p31
        $region22: #{tpu_custom_call.1} parent=19 // pred_check_branch
          %108 = sbr.rel (%p106) target = $region24
        $region23: #{tpu_custom_call.1} parent=19 // pred_region
          %s109 = sand.u32 %s21, 1
          %s110 = scalar_lea.sflag [#allocation3], %s109
          %s111 = sand.u32 %s21, 1
          %s112 = smul.addr %s111, 1536
          %s113 = scalar_lea.vmem [#allocation2], %s112
          %s114 = smul.u32 64, %s11
          %s116 = ssub.s32 24576, 24576
          %117 = vsyncadd %s110, %s116
          %s118 = smul.addr %s114, 3
          %s119 = smul.addr %s118, 128
          %s120 = scalar_lea.hbm %s0, %s119
          %s121 = sshll.u32 %s113, 4
          %s122 = int_to_ptr.vmem [resolvable:$true] %s121
          %127 = dma.hbm_to_vmem [thread:$0]  %s120, 24576, %s122, %s110, 384, 384, 24
        $region24: #{tpu_custom_call.1} parent=19 // pred_fallthru
          _
      $region20: #{tpu_custom_call.1} parent=5 // pred_fallthru
        _
      %p128 = scmp.le.s32.totalorder 1, %s11
      %p129 = scmp.lt.s32.totalorder %s11, 3
      %p130 = pnand %p128, %p129
      %p131 = pneg %p130
      // Predicated region
      $region25: #{tpu_custom_call.1} parent=5 // pred_check
        _
      $region26: #{tpu_custom_call.1} parent=5 // pred_check_branch
        %133 = sbr.rel (%p130) target = $region28
      $region27: #{tpu_custom_call.1} parent=5 // pred_region
        %s134 = ssub.s32 %s11, 1
        %s135 = sand.u32 %s24, 1
        %s136 = scalar_lea.sflag [#allocation3], %s135
        %s137 = sand.u32 %s24, 1
        %s138 = smul.addr %s137, 1536
        %s139 = scalar_lea.vmem [#allocation2], %s138
        // Predicated region
        $region29: #{tpu_custom_call.1} parent=27 // pred_check
          %p140 = pneg %p37
        $region30: #{tpu_custom_call.1} parent=27 // pred_check_branch
          %142 = sbr.rel (%p140) target = $region32
        $region31: #{tpu_custom_call.1} parent=27 // pred_region
          %143 = dma.done %s136, 24576
        $region32: #{tpu_custom_call.1} parent=27 // pred_fallthru
          _
        %s144 = sand.u32 %s24, 1
        %s145 = scalar_lea.sflag [#allocation3], %s144
        %s146 = sand.u32 %s24, 1
        %s147 = smul.addr %s146, 1536
        %s148 = scalar_lea.vmem [#allocation2], %s147
        %p149 = pneg %p37
        %p150 = pneg %p34
        %p151 = pneg %p58
        %p152 = pneg %p55
        %p153 = pneg %p84
        %p154 = pneg %p81
        %s155 = smul.u32 64, %s16
        %p156 = scmp.lt.s32.totalorder %s155, 127
        %s157 = scalar_select %p156, %s155, 127
        %s158 = smul.addr %s157, 8
        %s159 = scalar_lea.vmem %s2, %s158
        %s160 = smul.u32 64, %s16
        %s161 = smul.u32 64, %s16
        %p162 = scmp.lt.s32.totalorder %s161, 127
        %s163 = scalar_select %p162, %s161, 127
        %s164 = smul.addr %s163, 8
        %s165 = scalar_lea.vmem %s2, %s164
        %s166 = smul.u32 64, %s16
        %v167 = vld [vmem:[%s1] sm:$0xff]
        %v168 = vld [vmem:[%s1 + $0x8] sm:$0xff]
        %v169 = vld [vmem:[%s1 + $0x10] sm:$0xff]
        %v170 = vld [vmem:[%s1 + $0x18] sm:$0xff]
        %v171 = vld [vmem:[%s1 + $0x20] sm:$0xff]
        %v172 = vld [vmem:[%s1 + $0x28] sm:$0xff]
        %v173 = vld [vmem:[%s1 + $0x30] sm:$0xff]
        %v174 = vld [vmem:[%s1 + $0x38] sm:$0xff]
        %v175 = vld [vmem:[%s1 + $0x40] sm:$0xff]
        %v176 = vld [vmem:[%s1 + $0x48] sm:$0xff]
        %v177 = vld [vmem:[%s1 + $0x50] sm:$0xff]
        %v178 = vld [vmem:[%s1 + $0x58] sm:$0xff]
        %v179 = vld [vmem:[%s1 + $0x60] sm:$0xff]
        %v180 = vld [vmem:[%s1 + $0x68] sm:$0xff]
        %v181 = vld [vmem:[%s1 + $0x70] sm:$0xff]
        %v182 = vld [vmem:[%s1 + $0x78] sm:$0xff]
        %v183 = vld [vmem:[%s1 + $0x80] sm:$0xff]
        %v184 = vld [vmem:[%s1 + $0x88] sm:$0xff]
        %v185 = vld [vmem:[%s1 + $0x90] sm:$0xff]
        %v186 = vld [vmem:[%s1 + $0x98] sm:$0xff]
        %v187 = vld [vmem:[%s1 + $0xa0] sm:$0xff]
        %v188 = vld [vmem:[%s1 + $0xa8] sm:$0xff]
        %v189 = vld [vmem:[%s1 + $0xb0] sm:$0xff]
        %v190 = vld [vmem:[%s1 + $0xb8] sm:$0xff]
        %v191 = vld [vmem:[%s1 + $0xc0] sm:$0xff]
        %v192 = vld [vmem:[%s1 + $0xc8] sm:$0xff]
        %v193 = vld [vmem:[%s1 + $0xd0] sm:$0xff]
        %v194 = vld [vmem:[%s1 + $0xd8] sm:$0xff]
        %v195 = vld [vmem:[%s1 + $0xe0] sm:$0xff]
        %v196 = vld [vmem:[%s1 + $0xe8] sm:$0xff]
        %v197 = vld [vmem:[%s1 + $0xf0] sm:$0xff]
        %v198 = vld [vmem:[%s1 + $0xf8] sm:$0xff]
        %v199 = vld [vmem:[%s1 + $0x100] sm:$0xff]
        %v200 = vld [vmem:[%s1 + $0x108] sm:$0xff]
        %v201 = vld [vmem:[%s1 + $0x110] sm:$0xff]
        %v202 = vld [vmem:[%s1 + $0x118] sm:$0xff]
        %v203 = vld [vmem:[%s1 + $0x120] sm:$0xff]
        %v204 = vld [vmem:[%s1 + $0x128] sm:$0xff]
        %v205 = vld [vmem:[%s1 + $0x130] sm:$0xff]
        %v206 = vld [vmem:[%s1 + $0x138] sm:$0xff]
        %v207 = vld [vmem:[%s1 + $0x140] sm:$0xff]
        %v208 = vld [vmem:[%s1 + $0x148] sm:$0xff]
        %v209 = vld [vmem:[%s1 + $0x150] sm:$0xff]
        %v210 = vld [vmem:[%s1 + $0x158] sm:$0xff]
        %v211 = vld [vmem:[%s1 + $0x160] sm:$0xff]
        %v212 = vld [vmem:[%s1 + $0x168] sm:$0xff]
        %v213 = vld [vmem:[%s1 + $0x170] sm:$0xff]
        %v214 = vld [vmem:[%s1 + $0x178] sm:$0xff]
        %s215 = smul.u32 0, 3
        %s216 = smul.addr %s215, 8
        %s217 = scalar_lea.vmem %s139, %s216 [#allocation2]
        %v218 = vld [vmem:[%s217] sm:$0xff]
        %v219 = vld [vmem:[%s217 + $0x8] sm:$0xff]
        %v220 = vld [vmem:[%s217 + $0x10] sm:$0xff]
        %v221 = vld [vmem:[%s217 + $0x18] sm:$0xff]
        %v222 = vld [vmem:[%s217 + $0x20] sm:$0xff]
        %v223 = vld [vmem:[%s217 + $0x28] sm:$0xff]
        %v224 = vld [vmem:[%s217 + $0x30] sm:$0xff]
        %v225 = vld [vmem:[%s217 + $0x38] sm:$0xff]
        %v226 = vld [vmem:[%s217 + $0x40] sm:$0xff]
        %v227 = vld [vmem:[%s217 + $0x48] sm:$0xff]
        %v228 = vld [vmem:[%s217 + $0x50] sm:$0xff]
        %v229 = vld [vmem:[%s217 + $0x58] sm:$0xff]
        %v230 = vld [vmem:[%s217 + $0x60] sm:$0xff]
        %v231 = vld [vmem:[%s217 + $0x68] sm:$0xff]
        %v232 = vld [vmem:[%s217 + $0x70] sm:$0xff]
        %v233 = vld [vmem:[%s217 + $0x78] sm:$0xff]
        %v234 = vld [vmem:[%s217 + $0x80] sm:$0xff]
        %v235 = vld [vmem:[%s217 + $0x88] sm:$0xff]
        %v236 = vld [vmem:[%s217 + $0x90] sm:$0xff]
        %v237 = vld [vmem:[%s217 + $0x98] sm:$0xff]
        %v238 = vld [vmem:[%s217 + $0xa0] sm:$0xff]
        %v239 = vld [vmem:[%s217 + $0xa8] sm:$0xff]
        %v240 = vld [vmem:[%s217 + $0xb0] sm:$0xff]
        %v241 = vld [vmem:[%s217 + $0xb8] sm:$0xff]
        %242 = vmatprep.subr.mxu0 0.0
        %243 = vmatpush1.msra.mxu0 %v167
        %244 = vmatprep.subr.mxu0 0.0
        %245 = vmatpush1.msra.mxu0 %v168
        %246 = vmatprep.subr.mxu0 0.0
        %247 = vmatpush1.msra.mxu0 %v169
        %248 = vmatprep.subr.mxu0 0.0
        %249 = vmatpush1.msra.mxu0 %v170
        %250 = vmatprep.subr.mxu0 0.0
        %251 = vmatpush1.msra.mxu0 %v171
        %252 = vmatprep.subr.mxu0 0.0
        %253 = vmatpush1.msra.mxu0 %v172
        %254 = vmatprep.subr.mxu0 0.0
        %255 = vmatpush1.msra.mxu0 %v173
        %256 = vmatprep.subr.mxu0 0.0
        %257 = vmatpush1.msra.mxu0 %v174
        %258 = vmatprep.subr.mxu0 0.0
        %259 = vmatpush1.msra.mxu0 %v175
        %260 = vmatprep.subr.mxu0 0.0
        %261 = vmatpush1.msra.mxu0 %v176
        %262 = vmatprep.subr.mxu0 0.0
        %263 = vmatpush1.msra.mxu0 %v177
        %264 = vmatprep.subr.mxu0 0.0
        %265 = vmatpush1.msra.mxu0 %v178
        %266 = vmatprep.subr.mxu0 0.0
        %267 = vmatpush1.msra.mxu0 %v179
        %268 = vmatprep.subr.mxu0 0.0
        %269 = vmatpush1.msra.mxu0 %v180
        %270 = vmatprep.subr.mxu0 0.0
        %271 = vmatpush1.msra.mxu0 %v181
        %272 = vmatprep.subr.mxu0 0.0
        %273 = vmatpush1.msra.mxu0 %v182
        %274 = vmatprep.subr.mxu0 0.0
        %275 = vmatpush1.msra.mxu0 %v183
        %276 = vmatprep.subr.mxu0 0.0
        %277 = vmatpush1.msra.mxu0 %v184
        %278 = vmatprep.subr.mxu0 0.0
        %279 = vmatpush1.msra.mxu0 %v185
        %280 = vmatprep.subr.mxu0 0.0
        %281 = vmatpush1.msra.mxu0 %v186
        %282 = vmatprep.subr.mxu0 0.0
        %283 = vmatpush1.msra.mxu0 %v187
        %284 = vmatprep.subr.mxu0 0.0
        %285 = vmatpush1.msra.mxu0 %v188
        %286 = vmatprep.subr.mxu0 0.0
        %287 = vmatpush1.msra.mxu0 %v189
        %288 = vmatprep.subr.mxu0 0.0
        %289 = vmatpush1.msra.mxu0 %v190
        %290 = vmatprep.subr.mxu0 0.0
        %291 = vmatpush1.msra.mxu0 %v191
        %292 = vmatprep.subr.mxu0 0.0
        %293 = vmatpush1.msra.mxu0 %v192
        %294 = vmatprep.subr.mxu0 0.0
        %295 = vmatpush1.msra.mxu0 %v193
        %296 = vmatprep.subr.mxu0 0.0
        %297 = vmatpush1.msra.mxu0 %v194
        %298 = vmatprep.subr.mxu0 0.0
        %299 = vmatpush1.msra.mxu0 %v195
        %300 = vmatprep.subr.mxu0 0.0
        %301 = vmatpush1.msra.mxu0 %v196
        %302 = vmatprep.subr.mxu0 0.0
        %303 = vmatpush1.msra.mxu0 %v197
        %304 = vmatprep.subr.mxu0 0.0
        %305 = vmatpush1.msra.mxu0 %v198
        %306 = vmatprep.mubr.f32.mxu0 %v219
        %307 = vmatmul.mubr.f32.gmra.mrb[0].mxu0 %v218
        %v308 = vpop.f32.mrb[0].mxu0
        %v309 = vadd.f32 0.0, %v308
        %v310 = vpop.f32.mrb[0].mxu0
        %311 = vmatprep.mubr.f32.mxu0 %v222
        %312 = vmatmul.mubr.f32.gmra.mrb[0].mxu0 %v221
        %v313 = vpop.f32.mrb[0].mxu0
        %v314 = vadd.f32 0.0, %v313
        %v315 = vpop.f32.mrb[0].mxu0
        %316 = vmatprep.mubr.f32.mxu0 %v225
        %317 = vmatmul.mubr.f32.gmra.mrb[0].mxu0 %v224
        %v318 = vpop.f32.mrb[0].mxu0
        %v319 = vadd.f32 0.0, %v318
        %v320 = vpop.f32.mrb[0].mxu0
        %321 = vmatprep.mubr.f32.mxu0 %v228
        %322 = vmatmul.mubr.f32.gmra.mrb[0].mxu0 %v227
        %v323 = vpop.f32.mrb[0].mxu0
        %v324 = vadd.f32 0.0, %v323
        %v325 = vpop.f32.mrb[0].mxu0
        %326 = vmatprep.mubr.f32.mxu0 %v231
        %327 = vmatmul.mubr.f32.gmra.mrb[0].mxu0 %v230
        %v328 = vpop.f32.mrb[0].mxu0
        %v329 = vadd.f32 0.0, %v328
        %v330 = vpop.f32.mrb[0].mxu0
        %331 = vmatprep.mubr.f32.mxu0 %v234
        %332 = vmatmul.mubr.f32.gmra.mrb[0].mxu0 %v233
        %v333 = vpop.f32.mrb[0].mxu0
        %v334 = vadd.f32 0.0, %v333
        %v335 = vpop.f32.mrb[0].mxu0
        %336 = vmatprep.mubr.f32.mxu0 %v237
        %337 = vmatmul.mubr.f32.gmra.mrb[0].mxu0 %v236
        %v338 = vpop.f32.mrb[0].mxu0
        %v339 = vadd.f32 0.0, %v338
        %v340 = vpop.f32.mrb[0].mxu0
        %341 = vmatprep.mubr.f32.mxu0 %v240
        %342 = vmatmul.mubr.f32.gmra.mrb[0].mxu0 %v239
        %v343 = vpop.f32.mrb[0].mxu0
        %v344 = vadd.f32 0.0, %v343
        %v345 = vpop.f32.mrb[0].mxu0
        %346 = vdwg.mxu0
        %347 = vmatprep.subr.mxu0 0.0
        %348 = vmatpush1.msra.mxu0 %v199
        %349 = vmatprep.subr.mxu0 0.0
        %350 = vmatpush1.msra.mxu0 %v200
        %351 = vmatprep.subr.mxu0 0.0
        %352 = vmatpush1.msra.mxu0 %v201
        %353 = vmatprep.subr.mxu0 0.0
        %354 = vmatpush1.msra.mxu0 %v202
        %355 = vmatprep.subr.mxu0 0.0
        %356 = vmatpush1.msra.mxu0 %v203
        %357 = vmatprep.subr.mxu0 0.0
        %358 = vmatpush1.msra.mxu0 %v204
        %359 = vmatprep.subr.mxu0 0.0
        %360 = vmatpush1.msra.mxu0 %v205
        %361 = vmatprep.subr.mxu0 0.0
        %362 = vmatpush1.msra.mxu0 %v206
        %363 = vmatprep.subr.mxu0 0.0
        %364 = vmatpush1.msra.mxu0 %v207
        %365 = vmatprep.subr.mxu0 0.0
        %366 = vmatpush1.msra.mxu0 %v208
        %367 = vmatprep.subr.mxu0 0.0
        %368 = vmatpush1.msra.mxu0 %v209
        %369 = vmatprep.subr.mxu0 0.0
        %370 = vmatpush1.msra.mxu0 %v210
        %371 = vmatprep.subr.mxu0 0.0
        %372 = vmatpush1.msra.mxu0 %v211
        %373 = vmatprep.subr.mxu0 0.0
        %374 = vmatpush1.msra.mxu0 %v212
        %375 = vmatprep.subr.mxu0 0.0
        %376 = vmatpush1.msra.mxu0 %v213
        %377 = vmatprep.subr.mxu0 0.0
        %378 = vmatpush1.msra.mxu0 %v214
        %379 = vmatprep.subr.mxu0 0.0
        %380 = vmatpush1.msra.mxu0 0.0
        %381 = vmatprep.subr.mxu0 0.0
        %382 = vmatpush1.msra.mxu0 0.0
        %383 = vmatprep.subr.mxu0 0.0
        %384 = vmatpush1.msra.mxu0 0.0
        %385 = vmatprep.subr.mxu0 0.0
        %386 = vmatpush1.msra.mxu0 0.0
        %387 = vmatprep.subr.mxu0 0.0
        %388 = vmatpush1.msra.mxu0 0.0
        %389 = vmatprep.subr.mxu0 0.0
        %390 = vmatpush1.msra.mxu0 0.0
        %391 = vmatprep.subr.mxu0 0.0
        %392 = vmatpush1.msra.mxu0 0.0
        %393 = vmatprep.subr.mxu0 0.0
        %394 = vmatpush1.msra.mxu0 0.0
        %395 = vmatprep.subr.mxu0 0.0
        %396 = vmatpush1.msra.mxu0 0.0
        %397 = vmatprep.subr.mxu0 0.0
        %398 = vmatpush1.msra.mxu0 0.0
        %399 = vmatprep.subr.mxu0 0.0
        %400 = vmatpush1.msra.mxu0 0.0
        %401 = vmatprep.subr.mxu0 0.0
        %402 = vmatpush1.msra.mxu0 0.0
        %403 = vmatprep.subr.mxu0 0.0
        %404 = vmatpush1.msra.mxu0 0.0
        %405 = vmatprep.subr.mxu0 0.0
        %406 = vmatpush1.msra.mxu0 0.0
        %407 = vmatprep.subr.mxu0 0.0
        %408 = vmatpush1.msra.mxu0 0.0
        %409 = vmatprep.subr.mxu0 0.0
        %410 = vmatpush1.msra.mxu0 0.0
        %411 = vmatprep.mubr.f32.mxu0 0.0
        %412 = vmatmul.mubr.f32.gmra.mrb[0].mxu0 %v220
        %v413 = vpop.f32.mrb[0].mxu0
        %v414 = vadd.f32 %v309, %v413
        %v415 = vpop.f32.mrb[0].mxu0
        %416 = vmatprep.mubr.f32.mxu0 0.0
        %417 = vmatmul.mubr.f32.gmra.mrb[0].mxu0 %v223
        %v418 = vpop.f32.mrb[0].mxu0
        %v419 = vadd.f32 %v314, %v418
        %v420 = vpop.f32.mrb[0].mxu0
        %421 = vmatprep.mubr.f32.mxu0 0.0
        %422 = vmatmul.mubr.f32.gmra.mrb[0].mxu0 %v226
        %v423 = vpop.f32.mrb[0].mxu0
        %v424 = vadd.f32 %v319, %v423
        %v425 = vpop.f32.mrb[0].mxu0
        %426 = vmatprep.mubr.f32.mxu0 0.0
        %427 = vmatmul.mubr.f32.gmra.mrb[0].mxu0 %v229
        %v428 = vpop.f32.mrb[0].mxu0
        %v429 = vadd.f32 %v324, %v428
        %v430 = vpop.f32.mrb[0].mxu0
        %431 = vmatprep.mubr.f32.mxu0 0.0
        %432 = vmatmul.mubr.f32.gmra.mrb[0].mxu0 %v232
        %v433 = vpop.f32.mrb[0].mxu0
        %v434 = vadd.f32 %v329, %v433
        %v435 = vpop.f32.mrb[0].mxu0
        %436 = vmatprep.mubr.f32.mxu0 0.0
        %437 = vmatmul.mubr.f32.gmra.mrb[0].mxu0 %v235
        %v438 = vpop.f32.mrb[0].mxu0
        %v439 = vadd.f32 %v334, %v438
        %v440 = vpop.f32.mrb[0].mxu0
        %441 = vmatprep.mubr.f32.mxu0 0.0
        %442 = vmatmul.mubr.f32.gmra.mrb[0].mxu0 %v238
        %v443 = vpop.f32.mrb[0].mxu0
        %v444 = vadd.f32 %v339, %v443
        %v445 = vpop.f32.mrb[0].mxu0
        %446 = vmatprep.mubr.f32.mxu0 0.0
        %447 = vmatmul.mubr.f32.gmra.mrb[0].mxu0 %v241
        %v448 = vpop.f32.mrb[0].mxu0
        %v449 = vadd.f32 %v344, %v448
        %v450 = vpop.f32.mrb[0].mxu0
        %451 = vdwg.mxu0
        %vm452 = vcmask 392192
        %453 = vst.msk [vmem:[%s165] sm:$0xff] %vm452, %v414
        %454 = vst.msk [vmem:[%s165 + $0x8] sm:$0xff] %vm452, %v419
        %455 = vst.msk [vmem:[%s165 + $0x10] sm:$0xff] %vm452, %v424
        %456 = vst.msk [vmem:[%s165 + $0x18] sm:$0xff] %vm452, %v429
        %457 = vst.msk [vmem:[%s165 + $0x20] sm:$0xff] %vm452, %v434
        %458 = vst.msk [vmem:[%s165 + $0x28] sm:$0xff] %vm452, %v439
        %459 = vst.msk [vmem:[%s165 + $0x30] sm:$0xff] %vm452, %v444
        %460 = vst.msk [vmem:[%s165 + $0x38] sm:$0xff] %vm452, %v449
        %s461 = smul.u32 8, 3
        %s462 = smul.addr %s461, 8
        %s463 = scalar_lea.vmem %s139, %s462 [#allocation2]
        %v464 = vld [vmem:[%s463] sm:$0xff]
        %v465 = vld [vmem:[%s463 + $0x8] sm:$0xff]
        %v466 = vld [vmem:[%s463 + $0x10] sm:$0xff]
        %v467 = vld [vmem:[%s463 + $0x18] sm:$0xff]
        %v468 = vld [vmem:[%s463 + $0x20] sm:$0xff]
        %v469 = vld [vmem:[%s463 + $0x28] sm:$0xff]
        %v470 = vld [vmem:[%s463 + $0x30] sm:$0xff]
        %v471 = vld [vmem:[%s463 + $0x38] sm:$0xff]
        %v472 = vld [vmem:[%s463 + $0x40] sm:$0xff]
        %v473 = vld [vmem:[%s463 + $0x48] sm:$0xff]
        %v474 = vld [vmem:[%s463 + $0x50] sm:$0xff]
        %v475 = vld [vmem:[%s463 + $0x58] sm:$0xff]
        %v476 = vld [vmem:[%s463 + $0x60] sm:$0xff]
        %v477 = vld [vmem:[%s463 + $0x68] sm:$0xff]
        %v478 = vld [vmem:[%s463 + $0x70] sm:$0xff]
        %v479 = vld [vmem:[%s463 + $0x78] sm:$0xff]
        %v480 = vld [vmem:[%s463 + $0x80] sm:$0xff]
        %v481 = vld [vmem:[%s463 + $0x88] sm:$0xff]
        %v482 = vld [vmem:[%s463 + $0x90] sm:$0xff]
        %v483 = vld [vmem:[%s463 + $0x98] sm:$0xff]
        %v484 = vld [vmem:[%s463 + $0xa0] sm:$0xff]
        %v485 = vld [vmem:[%s463 + $0xa8] sm:$0xff]
        %v486 = vld [vmem:[%s463 + $0xb0] sm:$0xff]
        %v487 = vld [vmem:[%s463 + $0xb8] sm:$0xff]
        %488 = vmatprep.subr.mxu0 0.0
        %489 = vmatpush1.msra.mxu0 %v167
        %490 = vmatprep.subr.mxu0 0.0
        %491 = vmatpush1.msra.mxu0 %v168
        %492 = vmatprep.subr.mxu0 0.0
        %493 = vmatpush1.msra.mxu0 %v169
        %494 = vmatprep.subr.mxu0 0.0
        %495 = vmatpush1.msra.mxu0 %v170
        %496 = vmatprep.subr.mxu0 0.0
        %497 = vmatpush1.msra.mxu0 %v171
        %498 = vmatprep.subr.mxu0 0.0
        %499 = vmatpush1.msra.mxu0 %v172
        %500 = vmatprep.subr.mxu0 0.0
        %501 = vmatpush1.msra.mxu0 %v173
        %502 = vmatprep.subr.mxu0 0.0
        %503 = vmatpush1.msra.mxu0 %v174
        %504 = vmatprep.subr.mxu0 0.0
        %505 = vmatpush1.msra.mxu0 %v175
        %506 = vmatprep.subr.mxu0 0.0
        %507 = vmatpush1.msra.mxu0 %v176
        %508 = vmatprep.subr.mxu0 0.0
        %509 = vmatpush1.msra.mxu0 %v177
        %510 = vmatprep.subr.mxu0 0.0
        %511 = vmatpush1.msra.mxu0 %v178
        %512 = vmatprep.subr.mxu0 0.0
        %513 = vmatpush1.msra.mxu0 %v179
        %514 = vmatprep.subr.mxu0 0.0
        %515 = vmatpush1.msra.mxu0 %v180
        %516 = vmatprep.subr.mxu0 0.0
        %517 = vmatpush1.msra.mxu0 %v181
        %518 = vmatprep.subr.mxu0 0.0
        %519 = vmatpush1.msra.mxu0 %v182
        %520 = vmatprep.subr.mxu0 0.0
        %521 = vmatpush1.msra.mxu0 %v183
        %522 = vmatprep.subr.mxu0 0.0
        %523 = vmatpush1.msra.mxu0 %v184
        %524 = vmatprep.subr.mxu0 0.0
        %525 = vmatpush1.msra.mxu0 %v185
        %526 = vmatprep.subr.mxu0 0.0
        %527 = vmatpush1.msra.mxu0 %v186
        %528 = vmatprep.subr.mxu0 0.0
        %529 = vmatpush1.msra.mxu0 %v187
        %530 = vmatprep.subr.mxu0 0.0
        %531 = vmatpush1.msra.mxu0 %v188
        %532 = vmatprep.subr.mxu0 0.0
        %533 = vmatpush1.msra.mxu0 %v189
        %534 = vmatprep.subr.mxu0 0.0
        %535 = vmatpush1.msra.mxu0 %v190
        %536 = vmatprep.subr.mxu0 0.0
        %537 = vmatpush1.msra.mxu0 %v191
        %538 = vmatprep.subr.mxu0 0.0
        %539 = vmatpush1.msra.mxu0 %v192
        %540 = vmatprep.subr.mxu0 0.0
        %541 = vmatpush1.msra.mxu0 %v193
        %542 = vmatprep.subr.mxu0 0.0
        %543 = vmatpush1.msra.mxu0 %v194
        %544 = vmatprep.subr.mxu0 0.0
        %545 = vmatpush1.msra.mxu0 %v195
        %546 = vmatprep.subr.mxu0 0.0
        %547 = vmatpush1.msra.mxu0 %v196
        %548 = vmatprep.subr.mxu0 0.0
        %549 = vmatpush1.msra.mxu0 %v197
        %550 = vmatprep.subr.mxu0 0.0
        %551 = vmatpush1.msra.mxu0 %v198
        %552 = vmatprep.mubr.f32.mxu0 %v465
        %553 = vmatmul.mubr.f32.gmra.mrb[0].mxu0 %v464
        %v554 = vpop.f32.mrb[0].mxu0
        %v555 = vadd.f32 0.0, %v554
        %v556 = vpop.f32.mrb[0].mxu0
        %557 = vmatprep.mubr.f32.mxu0 %v468
        %558 = vmatmul.mubr.f32.gmra.mrb[0].mxu0 %v467
        %v559 = vpop.f32.mrb[0].mxu0
        %v560 = vadd.f32 0.0, %v559
        %v561 = vpop.f32.mrb[0].mxu0
        %562 = vmatprep.mubr.f32.mxu0 %v471
        %563 = vmatmul.mubr.f32.gmra.mrb[0].mxu0 %v470
        %v564 = vpop.f32.mrb[0].mxu0
        %v565 = vadd.f32 0.0, %v564
        %v566 = vpop.f32.mrb[0].mxu0
        %567 = vmatprep.mubr.f32.mxu0 %v474
        %568 = vmatmul.mubr.f32.gmra.mrb[0].mxu0 %v473
        %v569 = vpop.f32.mrb[0].mxu0
        %v570 = vadd.f32 0.0, %v569
        %v571 = vpop.f32.mrb[0].mxu0
        %572 = vmatprep.mubr.f32.mxu0 %v477
        %573 = vmatmul.mubr.f32.gmra.mrb[0].mxu0 %v476
        %v574 = vpop.f32.mrb[0].mxu0
        %v575 = vadd.f32 0.0, %v574
        %v576 = vpop.f32.mrb[0].mxu0
        %577 = vmatprep.mubr.f32.mxu0 %v480
        %578 = vmatmul.mubr.f32.gmra.mrb[0].mxu0 %v479
        %v579 = vpop.f32.mrb[0].mxu0
        %v580 = vadd.f32 0.0, %v579
        %v581 = vpop.f32.mrb[0].mxu0
        %582 = vmatprep.mubr.f32.mxu0 %v483
        %583 = vmatmul.mubr.f32.gmra.mrb[0].mxu0 %v482
        %v584 = vpop.f32.mrb[0].mxu0
        %v585 = vadd.f32 0.0, %v584
        %v586 = vpop.f32.mrb[0].mxu0
        %587 = vmatprep.mubr.f32.mxu0 %v486
        %588 = vmatmul.mubr.f32.gmra.mrb[0].mxu0 %v485
        %v589 = vpop.f32.mrb[0].mxu0
        %v590 = vadd.f32 0.0, %v589
        %v591 = vpop.f32.mrb[0].mxu0
        %592 = vdwg.mxu0
        %593 = vmatprep.subr.mxu0 0.0
        %594 = vmatpush1.msra.mxu0 %v199
        %595 = vmatprep.subr.mxu0 0.0
        %596 = vmatpush1.msra.mxu0 %v200
        %597 = vmatprep.subr.mxu0 0.0
        %598 = vmatpush1.msra.mxu0 %v201
        %599 = vmatprep.subr.mxu0 0.0
        %600 = vmatpush1.msra.mxu0 %v202
        %601 = vmatprep.subr.mxu0 0.0
        %602 = vmatpush1.msra.mxu0 %v203
        %603 = vmatprep.subr.mxu0 0.0
        %604 = vmatpush1.msra.mxu0 %v204
        %605 = vmatprep.subr.mxu0 0.0
        %606 = vmatpush1.msra.mxu0 %v205
        %607 = vmatprep.subr.mxu0 0.0
        %608 = vmatpush1.msra.mxu0 %v206
        %609 = vmatprep.subr.mxu0 0.0
        %610 = vmatpush1.msra.mxu0 %v207
        %611 = vmatprep.subr.mxu0 0.0
        %612 = vmatpush1.msra.mxu0 %v208
        %613 = vmatprep.subr.mxu0 0.0
        %614 = vmatpush1.msra.mxu0 %v209
        %615 = vmatprep.subr.mxu0 0.0
        %616 = vmatpush1.msra.mxu0 %v210
        %617 = vmatprep.subr.mxu0 0.0
        %618 = vmatpush1.msra.mxu0 %v211
        %619 = vmatprep.subr.mxu0 0.0
        %620 = vmatpush1.msra.mxu0 %v212
        %621 = vmatprep.subr.mxu0 0.0
        %622 = vmatpush1.msra.mxu0 %v213
        %623 = vmatprep.subr.mxu0 0.0
        %624 = vmatpush1.msra.mxu0 %v214
        %625 = vmatprep.subr.mxu0 0.0
        %626 = vmatpush1.msra.mxu0 0.0
        %627 = vmatprep.subr.mxu0 0.0
        %628 = vmatpush1.msra.mxu0 0.0
        %629 = vmatprep.subr.mxu0 0.0
        %630 = vmatpush1.msra.mxu0 0.0
        %631 = vmatprep.subr.mxu0 0.0
        %632 = vmatpush1.msra.mxu0 0.0
        %633 = vmatprep.subr.mxu0 0.0
        %634 = vmatpush1.msra.mxu0 0.0
        %635 = vmatprep.subr.mxu0 0.0
        %636 = vmatpush1.msra.mxu0 0.0
        %637 = vmatprep.subr.mxu0 0.0
        %638 = vmatpush1.msra.mxu0 0.0
        %639 = vmatprep.subr.mxu0 0.0
        %640 = vmatpush1.msra.mxu0 0.0
        %641 = vmatprep.subr.mxu0 0.0
        %642 = vmatpush1.msra.mxu0 0.0
        %643 = vmatprep.subr.mxu0 0.0
        %644 = vmatpush1.msra.mxu0 0.0
        %645 = vmatprep.subr.mxu0 0.0
        %646 = vmatpush1.msra.mxu0 0.0
        %647 = vmatprep.subr.mxu0 0.0
        %648 = vmatpush1.msra.mxu0 0.0
        %649 = vmatprep.subr.mxu0 0.0
        %650 = vmatpush1.msra.mxu0 0.0
        %651 = vmatprep.subr.mxu0 0.0
        %652 = vmatpush1.msra.mxu0 0.0
        %653 = vmatprep.subr.mxu0 0.0
        %654 = vmatpush1.msra.mxu0 0.0
        %655 = vmatprep.subr.mxu0 0.0
        %656 = vmatpush1.msra.mxu0 0.0
        %657 = vmatprep.mubr.f32.mxu0 0.0
        %658 = vmatmul.mubr.f32.gmra.mrb[0].mxu0 %v466
        %v659 = vpop.f32.mrb[0].mxu0
        %v660 = vadd.f32 %v555, %v659
        %v661 = vpop.f32.mrb[0].mxu0
        %662 = vmatprep.mubr.f32.mxu0 0.0
        %663 = vmatmul.mubr.f32.gmra.mrb[0].mxu0 %v469
        %v664 = vpop.f32.mrb[0].mxu0
        %v665 = vadd.f32 %v560, %v664
        %v666 = vpop.f32.mrb[0].mxu0
        %667 = vmatprep.mubr.f32.mxu0 0.0
        %668 = vmatmul.mubr.f32.gmra.mrb[0].mxu0 %v472
        %v669 = vpop.f32.mrb[0].mxu0
        %v670 = vadd.f32 %v565, %v669
        %v671 = vpop.f32.mrb[0].mxu0
        %672 = vmatprep.mubr.f32.mxu0 0.0
        %673 = vmatmul.mubr.f32.gmra.mrb[0].mxu0 %v475
        %v674 = vpop.f32.mrb[0].mxu0
        %v675 = vadd.f32 %v570, %v674
        %v676 = vpop.f32.mrb[0].mxu0
        %677 = vmatprep.mubr.f32.mxu0 0.0
        %678 = vmatmul.mubr.f32.gmra.mrb[0].mxu0 %v478
        %v679 = vpop.f32.mrb[0].mxu0
        %v680 = vadd.f32 %v575, %v679
        %v681 = vpop.f32.mrb[0].mxu0
        %682 = vmatprep.mubr.f32.mxu0 0.0
        %683 = vmatmul.mubr.f32.gmra.mrb[0].mxu0 %v481
        %v684 = vpop.f32.mrb[0].mxu0
        %v685 = vadd.f32 %v580, %v684
        %v686 = vpop.f32.mrb[0].mxu0
        %687 = vmatprep.mubr.f32.mxu0 0.0
        %688 = vmatmul.mubr.f32.gmra.mrb[0].mxu0 %v484
        %v689 = vpop.f32.mrb[0].mxu0
        %v690 = vadd.f32 %v585, %v689
        %v691 = vpop.f32.mrb[0].mxu0
        %692 = vmatprep.mubr.f32.mxu0 0.0
        %693 = vmatmul.mubr.f32.gmra.mrb[0].mxu0 %v487
        %v694 = vpop.f32.mrb[0].mxu0
        %v695 = vadd.f32 %v590, %v694
        %v696 = vpop.f32.mrb[0].mxu0
        %697 = vdwg.mxu0
        %s698 = scalar_lea.vmem %s165, 64
        %699 = vst.msk [vmem:[%s698] sm:$0xff] %vm452, %v660
        %700 = vst.msk [vmem:[%s698 + $0x8] sm:$0xff] %vm452, %v665
        %701 = vst.msk [vmem:[%s698 + $0x10] sm:$0xff] %vm452, %v670
        %702 = vst.msk [vmem:[%s698 + $0x18] sm:$0xff] %vm452, %v675
        %703 = vst.msk [vmem:[%s698 + $0x20] sm:$0xff] %vm452, %v680
        %704 = vst.msk [vmem:[%s698 + $0x28] sm:$0xff] %vm452, %v685
        %705 = vst.msk [vmem:[%s698 + $0x30] sm:$0xff] %vm452, %v690
        %706 = vst.msk [vmem:[%s698 + $0x38] sm:$0xff] %vm452, %v695
        %s707 = smul.u32 16, 3
        %s708 = smul.addr %s707, 8
        %s709 = scalar_lea.vmem %s139, %s708 [#allocation2]
        %v710 = vld [vmem:[%s709] sm:$0xff]
        %v711 = vld [vmem:[%s709 + $0x8] sm:$0xff]
        %v712 = vld [vmem:[%s709 + $0x10] sm:$0xff]
        %v713 = vld [vmem:[%s709 + $0x18] sm:$0xff]
        %v714 = vld [vmem:[%s709 + $0x20] sm:$0xff]
        %v715 = vld [vmem:[%s709 + $0x28] sm:$0xff]
        %v716 = vld [vmem:[%s709 + $0x30] sm:$0xff]
        %v717 = vld [vmem:[%s709 + $0x38] sm:$0xff]
        %v718 = vld [vmem:[%s709 + $0x40] sm:$0xff]
        %v719 = vld [vmem:[%s709 + $0x48] sm:$0xff]
        %v720 = vld [vmem:[%s709 + $0x50] sm:$0xff]
        %v721 = vld [vmem:[%s709 + $0x58] sm:$0xff]
        %v722 = vld [vmem:[%s709 + $0x60] sm:$0xff]
        %v723 = vld [vmem:[%s709 + $0x68] sm:$0xff]
        %v724 = vld [vmem:[%s709 + $0x70] sm:$0xff]
        %v725 = vld [vmem:[%s709 + $0x78] sm:$0xff]
        %v726 = vld [vmem:[%s709 + $0x80] sm:$0xff]
        %v727 = vld [vmem:[%s709 + $0x88] sm:$0xff]
        %v728 = vld [vmem:[%s709 + $0x90] sm:$0xff]
        %v729 = vld [vmem:[%s709 + $0x98] sm:$0xff]
        %v730 = vld [vmem:[%s709 + $0xa0] sm:$0xff]
        %v731 = vld [vmem:[%s709 + $0xa8] sm:$0xff]
        %v732 = vld [vmem:[%s709 + $0xb0] sm:$0xff]
        %v733 = vld [vmem:[%s709 + $0xb8] sm:$0xff]
        %734 = vmatprep.subr.mxu0 0.0
        %735 = vmatpush1.msra.mxu0 %v167
        %736 = vmatprep.subr.mxu0 0.0
        %737 = vmatpush1.msra.mxu0 %v168
        %738 = vmatprep.subr.mxu0 0.0
        %739 = vmatpush1.msra.mxu0 %v169
        %740 = vmatprep.subr.mxu0 0.0
        %741 = vmatpush1.msra.mxu0 %v170
        %742 = vmatprep.subr.mxu0 0.0
        %743 = vmatpush1.msra.mxu0 %v171
        %744 = vmatprep.subr.mxu0 0.0
        %745 = vmatpush1.msra.mxu0 %v172
        %746 = vmatprep.subr.mxu0 0.0
        %747 = vmatpush1.msra.mxu0 %v173
        %748 = vmatprep.subr.mxu0 0.0
        %749 = vmatpush1.msra.mxu0 %v174
        %750 = vmatprep.subr.mxu0 0.0
        %751 = vmatpush1.msra.mxu0 %v175
        %752 = vmatprep.subr.mxu0 0.0
        %753 = vmatpush1.msra.mxu0 %v176
        %754 = vmatprep.subr.mxu0 0.0
        %755 = vmatpush1.msra.mxu0 %v177
        %756 = vmatprep.subr.mxu0 0.0
        %757 = vmatpush1.msra.mxu0 %v178
        %758 = vmatprep.subr.mxu0 0.0
        %759 = vmatpush1.msra.mxu0 %v179
        %760 = vmatprep.subr.mxu0 0.0
        %761 = vmatpush1.msra.mxu0 %v180
        %762 = vmatprep.subr.mxu0 0.0
        %763 = vmatpush1.msra.mxu0 %v181
        %764 = vmatprep.subr.mxu0 0.0
        %765 = vmatpush1.msra.mxu0 %v182
        %766 = vmatprep.subr.mxu0 0.0
        %767 = vmatpush1.msra.mxu0 %v183
        %768 = vmatprep.subr.mxu0 0.0
        %769 = vmatpush1.msra.mxu0 %v184
        %770 = vmatprep.subr.mxu0 0.0
        %771 = vmatpush1.msra.mxu0 %v185
        %772 = vmatprep.subr.mxu0 0.0
        %773 = vmatpush1.msra.mxu0 %v186
        %774 = vmatprep.subr.mxu0 0.0
        %775 = vmatpush1.msra.mxu0 %v187
        %776 = vmatprep.subr.mxu0 0.0
        %777 = vmatpush1.msra.mxu0 %v188
        %778 = vmatprep.subr.mxu0 0.0
        %779 = vmatpush1.msra.mxu0 %v189
        %780 = vmatprep.subr.mxu0 0.0
        %781 = vmatpush1.msra.mxu0 %v190
        %782 = vmatprep.subr.mxu0 0.0
        %783 = vmatpush1.msra.mxu0 %v191
        %784 = vmatprep.subr.mxu0 0.0
        %785 = vmatpush1.msra.mxu0 %v192
        %786 = vmatprep.subr.mxu0 0.0
        %787 = vmatpush1.msra.mxu0 %v193
        %788 = vmatprep.subr.mxu0 0.0
        %789 = vmatpush1.msra.mxu0 %v194
        %790 = vmatprep.subr.mxu0 0.0
        %791 = vmatpush1.msra.mxu0 %v195
        %792 = vmatprep.subr.mxu0 0.0
        %793 = vmatpush1.msra.mxu0 %v196
        %794 = vmatprep.subr.mxu0 0.0
        %795 = vmatpush1.msra.mxu0 %v197
        %796 = vmatprep.subr.mxu0 0.0
        %797 = vmatpush1.msra.mxu0 %v198
        %798 = vmatprep.mubr.f32.mxu0 %v711
        %799 = vmatmul.mubr.f32.gmra.mrb[0].mxu0 %v710
        %v800 = vpop.f32.mrb[0].mxu0
        %v801 = vadd.f32 0.0, %v800
        %v802 = vpop.f32.mrb[0].mxu0
        %803 = vmatprep.mubr.f32.mxu0 %v714
        %804 = vmatmul.mubr.f32.gmra.mrb[0].mxu0 %v713
        %v805 = vpop.f32.mrb[0].mxu0
        %v806 = vadd.f32 0.0, %v805
        %v807 = vpop.f32.mrb[0].mxu0
        %808 = vmatprep.mubr.f32.mxu0 %v717
        %809 = vmatmul.mubr.f32.gmra.mrb[0].mxu0 %v716
        %v810 = vpop.f32.mrb[0].mxu0
        %v811 = vadd.f32 0.0, %v810
        %v812 = vpop.f32.mrb[0].mxu0
        %813 = vmatprep.mubr.f32.mxu0 %v720
        %814 = vmatmul.mubr.f32.gmra.mrb[0].mxu0 %v719
        %v815 = vpop.f32.mrb[0].mxu0
        %v816 = vadd.f32 0.0, %v815
        %v817 = vpop.f32.mrb[0].mxu0
        %818 = vmatprep.mubr.f32.mxu0 %v723
        %819 = vmatmul.mubr.f32.gmra.mrb[0].mxu0 %v722
        %v820 = vpop.f32.mrb[0].mxu0
        %v821 = vadd.f32 0.0, %v820
        %v822 = vpop.f32.mrb[0].mxu0
        %823 = vmatprep.mubr.f32.mxu0 %v726
        %824 = vmatmul.mubr.f32.gmra.mrb[0].mxu0 %v725
        %v825 = vpop.f32.mrb[0].mxu0
        %v826 = vadd.f32 0.0, %v825
        %v827 = vpop.f32.mrb[0].mxu0
        %828 = vmatprep.mubr.f32.mxu0 %v729
        %829 = vmatmul.mubr.f32.gmra.mrb[0].mxu0 %v728
        %v830 = vpop.f32.mrb[0].mxu0
        %v831 = vadd.f32 0.0, %v830
        %v832 = vpop.f32.mrb[0].mxu0
        %833 = vmatprep.mubr.f32.mxu0 %v732
        %834 = vmatmul.mubr.f32.gmra.mrb[0].mxu0 %v731
        %v835 = vpop.f32.mrb[0].mxu0
        %v836 = vadd.f32 0.0, %v835
        %v837 = vpop.f32.mrb[0].mxu0
        %838 = vdwg.mxu0
        %839 = vmatprep.subr.mxu0 0.0
        %840 = vmatpush1.msra.mxu0 %v199
        %841 = vmatprep.subr.mxu0 0.0
        %842 = vmatpush1.msra.mxu0 %v200
        %843 = vmatprep.subr.mxu0 0.0
        %844 = vmatpush1.msra.mxu0 %v201
        %845 = vmatprep.subr.mxu0 0.0
        %846 = vmatpush1.msra.mxu0 %v202
        %847 = vmatprep.subr.mxu0 0.0
        %848 = vmatpush1.msra.mxu0 %v203
        %849 = vmatprep.subr.mxu0 0.0
        %850 = vmatpush1.msra.mxu0 %v204
        %851 = vmatprep.subr.mxu0 0.0
        %852 = vmatpush1.msra.mxu0 %v205
        %853 = vmatprep.subr.mxu0 0.0
        %854 = vmatpush1.msra.mxu0 %v206
        %855 = vmatprep.subr.mxu0 0.0
        %856 = vmatpush1.msra.mxu0 %v207
        %857 = vmatprep.subr.mxu0 0.0
        %858 = vmatpush1.msra.mxu0 %v208
        %859 = vmatprep.subr.mxu0 0.0
        %860 = vmatpush1.msra.mxu0 %v209
        %861 = vmatprep.subr.mxu0 0.0
        %862 = vmatpush1.msra.mxu0 %v210
        %863 = vmatprep.subr.mxu0 0.0
        %864 = vmatpush1.msra.mxu0 %v211
        %865 = vmatprep.subr.mxu0 0.0
        %866 = vmatpush1.msra.mxu0 %v212
        %867 = vmatprep.subr.mxu0 0.0
        %868 = vmatpush1.msra.mxu0 %v213
        %869 = vmatprep.subr.mxu0 0.0
        %870 = vmatpush1.msra.mxu0 %v214
        %871 = vmatprep.subr.mxu0 0.0
        %872 = vmatpush1.msra.mxu0 0.0
        %873 = vmatprep.subr.mxu0 0.0
        %874 = vmatpush1.msra.mxu0 0.0
        %875 = vmatprep.subr.mxu0 0.0
        %876 = vmatpush1.msra.mxu0 0.0
        %877 = vmatprep.subr.mxu0 0.0
        %878 = vmatpush1.msra.mxu0 0.0
        %879 = vmatprep.subr.mxu0 0.0
        %880 = vmatpush1.msra.mxu0 0.0
        %881 = vmatprep.subr.mxu0 0.0
        %882 = vmatpush1.msra.mxu0 0.0
        %883 = vmatprep.subr.mxu0 0.0
        %884 = vmatpush1.msra.mxu0 0.0
        %885 = vmatprep.subr.mxu0 0.0
        %886 = vmatpush1.msra.mxu0 0.0
        %887 = vmatprep.subr.mxu0 0.0
        %888 = vmatpush1.msra.mxu0 0.0
        %889 = vmatprep.subr.mxu0 0.0
        %890 = vmatpush1.msra.mxu0 0.0
        %891 = vmatprep.subr.mxu0 0.0
        %892 = vmatpush1.msra.mxu0 0.0
        %893 = vmatprep.subr.mxu0 0.0
        %894 = vmatpush1.msra.mxu0 0.0
        %895 = vmatprep.subr.mxu0 0.0
        %896 = vmatpush1.msra.mxu0 0.0
        %897 = vmatprep.subr.mxu0 0.0
        %898 = vmatpush1.msra.mxu0 0.0
        %899 = vmatprep.subr.mxu0 0.0
        %900 = vmatpush1.msra.mxu0 0.0
        %901 = vmatprep.subr.mxu0 0.0
        %902 = vmatpush1.msra.mxu0 0.0
        %903 = vmatprep.mubr.f32.mxu0 0.0
        %904 = vmatmul.mubr.f32.gmra.mrb[0].mxu0 %v712
        %v905 = vpop.f32.mrb[0].mxu0
        %v906 = vadd.f32 %v801, %v905
        %v907 = vpop.f32.mrb[0].mxu0
        %908 = vmatprep.mubr.f32.mxu0 0.0
        %909 = vmatmul.mubr.f32.gmra.mrb[0].mxu0 %v715
        %v910 = vpop.f32.mrb[0].mxu0
        %v911 = vadd.f32 %v806, %v910
        %v912 = vpop.f32.mrb[0].mxu0
        %913 = vmatprep.mubr.f32.mxu0 0.0
        %914 = vmatmul.mubr.f32.gmra.mrb[0].mxu0 %v718
        %v915 = vpop.f32.mrb[0].mxu0
        %v916 = vadd.f32 %v811, %v915
        %v917 = vpop.f32.mrb[0].mxu0
        %918 = vmatprep.mubr.f32.mxu0 0.0
        %919 = vmatmul.mubr.f32.gmra.mrb[0].mxu0 %v721
        %v920 = vpop.f32.mrb[0].mxu0
        %v921 = vadd.f32 %v816, %v920
        %v922 = vpop.f32.mrb[0].mxu0
        %923 = vmatprep.mubr.f32.mxu0 0.0
        %924 = vmatmul.mubr.f32.gmra.mrb[0].mxu0 %v724
        %v925 = vpop.f32.mrb[0].mxu0
        %v926 = vadd.f32 %v821, %v925
        %v927 = vpop.f32.mrb[0].mxu0
        %928 = vmatprep.mubr.f32.mxu0 0.0
        %929 = vmatmul.mubr.f32.gmra.mrb[0].mxu0 %v727
        %v930 = vpop.f32.mrb[0].mxu0
        %v931 = vadd.f32 %v826, %v930
        %v932 = vpop.f32.mrb[0].mxu0
        %933 = vmatprep.mubr.f32.mxu0 0.0
        %934 = vmatmul.mubr.f32.gmra.mrb[0].mxu0 %v730
        %v935 = vpop.f32.mrb[0].mxu0
        %v936 = vadd.f32 %v831, %v935
        %v937 = vpop.f32.mrb[0].mxu0
        %938 = vmatprep.mubr.f32.mxu0 0.0
        %939 = vmatmul.mubr.f32.gmra.mrb[0].mxu0 %v733
        %v940 = vpop.f32.mrb[0].mxu0
        %v941 = vadd.f32 %v836, %v940
        %v942 = vpop.f32.mrb[0].mxu0
        %943 = vdwg.mxu0
        %s944 = scalar_lea.vmem %s165, 128
        %945 = vst.msk [vmem:[%s944] sm:$0xff] %vm452, %v906
        %946 = vst.msk [vmem:[%s944 + $0x8] sm:$0xff] %vm452, %v911
        %947 = vst.msk [vmem:[%s944 + $0x10] sm:$0xff] %vm452, %v916
        %948 = vst.msk [vmem:[%s944 + $0x18] sm:$0xff] %vm452, %v921
        %949 = vst.msk [vmem:[%s944 + $0x20] sm:$0xff] %vm452, %v926
        %950 = vst.msk [vmem:[%s944 + $0x28] sm:$0xff] %vm452, %v931
        %951 = vst.msk [vmem:[%s944 + $0x30] sm:$0xff] %vm452, %v936
        %952 = vst.msk [vmem:[%s944 + $0x38] sm:$0xff] %vm452, %v941
        %s953 = smul.u32 24, 3
        %s954 = smul.addr %s953, 8
        %s955 = scalar_lea.vmem %s139, %s954 [#allocation2]
        %v956 = vld [vmem:[%s955] sm:$0xff]
        %v957 = vld [vmem:[%s955 + $0x8] sm:$0xff]
        %v958 = vld [vmem:[%s955 + $0x10] sm:$0xff]
        %v959 = vld [vmem:[%s955 + $0x18] sm:$0xff]
        %v960 = vld [vmem:[%s955 + $0x20] sm:$0xff]
        %v961 = vld [vmem:[%s955 + $0x28] sm:$0xff]
        %v962 = vld [vmem:[%s955 + $0x30] sm:$0xff]
        %v963 = vld [vmem:[%s955 + $0x38] sm:$0xff]
        %v964 = vld [vmem:[%s955 + $0x40] sm:$0xff]
        %v965 = vld [vmem:[%s955 + $0x48] sm:$0xff]
        %v966 = vld [vmem:[%s955 + $0x50] sm:$0xff]
        %v967 = vld [vmem:[%s955 + $0x58] sm:$0xff]
        %v968 = vld [vmem:[%s955 + $0x60] sm:$0xff]
        %v969 = vld [vmem:[%s955 + $0x68] sm:$0xff]
        %v970 = vld [vmem:[%s955 + $0x70] sm:$0xff]
        %v971 = vld [vmem:[%s955 + $0x78] sm:$0xff]
        %v972 = vld [vmem:[%s955 + $0x80] sm:$0xff]
        %v973 = vld [vmem:[%s955 + $0x88] sm:$0xff]
        %v974 = vld [vmem:[%s955 + $0x90] sm:$0xff]
        %v975 = vld [vmem:[%s955 + $0x98] sm:$0xff]
        %v976 = vld [vmem:[%s955 + $0xa0] sm:$0xff]
        %v977 = vld [vmem:[%s955 + $0xa8] sm:$0xff]
        %v978 = vld [vmem:[%s955 + $0xb0] sm:$0xff]
        %v979 = vld [vmem:[%s955 + $0xb8] sm:$0xff]
        %980 = vmatprep.subr.mxu0 0.0
        %981 = vmatpush1.msra.mxu0 %v167
        %982 = vmatprep.subr.mxu0 0.0
        %983 = vmatpush1.msra.mxu0 %v168
        %984 = vmatprep.subr.mxu0 0.0
        %985 = vmatpush1.msra.mxu0 %v169
        %986 = vmatprep.subr.mxu0 0.0
        %987 = vmatpush1.msra.mxu0 %v170
        %988 = vmatprep.subr.mxu0 0.0
        %989 = vmatpush1.msra.mxu0 %v171
        %990 = vmatprep.subr.mxu0 0.0
        %991 = vmatpush1.msra.mxu0 %v172
        %992 = vmatprep.subr.mxu0 0.0
        %993 = vmatpush1.msra.mxu0 %v173
        %994 = vmatprep.subr.mxu0 0.0
        %995 = vmatpush1.msra.mxu0 %v174
        %996 = vmatprep.subr.mxu0 0.0
        %997 = vmatpush1.msra.mxu0 %v175
        %998 = vmatprep.subr.mxu0 0.0
        %999 = vmatpush1.msra.mxu0 %v176
        %1000 = vmatprep.subr.mxu0 0.0
        %1001 = vmatpush1.msra.mxu0 %v177
        %1002 = vmatprep.subr.mxu0 0.0
        %1003 = vmatpush1.msra.mxu0 %v178
        %1004 = vmatprep.subr.mxu0 0.0
        %1005 = vmatpush1.msra.mxu0 %v179
        %1006 = vmatprep.subr.mxu0 0.0
        %1007 = vmatpush1.msra.mxu0 %v180
        %1008 = vmatprep.subr.mxu0 0.0
        %1009 = vmatpush1.msra.mxu0 %v181
        %1010 = vmatprep.subr.mxu0 0.0
        %1011 = vmatpush1.msra.mxu0 %v182
        %1012 = vmatprep.subr.mxu0 0.0
        %1013 = vmatpush1.msra.mxu0 %v183
        %1014 = vmatprep.subr.mxu0 0.0
        %1015 = vmatpush1.msra.mxu0 %v184
        %1016 = vmatprep.subr.mxu0 0.0
        %1017 = vmatpush1.msra.mxu0 %v185
        %1018 = vmatprep.subr.mxu0 0.0
        %1019 = vmatpush1.msra.mxu0 %v186
        %1020 = vmatprep.subr.mxu0 0.0
        %1021 = vmatpush1.msra.mxu0 %v187
        %1022 = vmatprep.subr.mxu0 0.0
        %1023 = vmatpush1.msra.mxu0 %v188
        %1024 = vmatprep.subr.mxu0 0.0
        %1025 = vmatpush1.msra.mxu0 %v189
        %1026 = vmatprep.subr.mxu0 0.0
        %1027 = vmatpush1.msra.mxu0 %v190
        %1028 = vmatprep.subr.mxu0 0.0
        %1029 = vmatpush1.msra.mxu0 %v191
        %1030 = vmatprep.subr.mxu0 0.0
        %1031 = vmatpush1.msra.mxu0 %v192
        %1032 = vmatprep.subr.mxu0 0.0
        %1033 = vmatpush1.msra.mxu0 %v193
        %1034 = vmatprep.subr.mxu0 0.0
        %1035 = vmatpush1.msra.mxu0 %v194
        %1036 = vmatprep.subr.mxu0 0.0
        %1037 = vmatpush1.msra.mxu0 %v195
        %1038 = vmatprep.subr.mxu0 0.0
        %1039 = vmatpush1.msra.mxu0 %v196
        %1040 = vmatprep.subr.mxu0 0.0
        %1041 = vmatpush1.msra.mxu0 %v197
        %1042 = vmatprep.subr.mxu0 0.0
        %1043 = vmatpush1.msra.mxu0 %v198
        %1044 = vmatprep.mubr.f32.mxu0 %v957
        %1045 = vmatmul.mubr.f32.gmra.mrb[0].mxu0 %v956
        %v1046 = vpop.f32.mrb[0].mxu0
        %v1047 = vadd.f32 0.0, %v1046
        %v1048 = vpop.f32.mrb[0].mxu0
        %1049 = vmatprep.mubr.f32.mxu0 %v960
        %1050 = vmatmul.mubr.f32.gmra.mrb[0].mxu0 %v959
        %v1051 = vpop.f32.mrb[0].mxu0
        %v1052 = vadd.f32 0.0, %v1051
        %v1053 = vpop.f32.mrb[0].mxu0
        %1054 = vmatprep.mubr.f32.mxu0 %v963
        %1055 = vmatmul.mubr.f32.gmra.mrb[0].mxu0 %v962
        %v1056 = vpop.f32.mrb[0].mxu0
        %v1057 = vadd.f32 0.0, %v1056
        %v1058 = vpop.f32.mrb[0].mxu0
        %1059 = vmatprep.mubr.f32.mxu0 %v966
        %1060 = vmatmul.mubr.f32.gmra.mrb[0].mxu0 %v965
        %v1061 = vpop.f32.mrb[0].mxu0
        %v1062 = vadd.f32 0.0, %v1061
        %v1063 = vpop.f32.mrb[0].mxu0
        %1064 = vmatprep.mubr.f32.mxu0 %v969
        %1065 = vmatmul.mubr.f32.gmra.mrb[0].mxu0 %v968
        %v1066 = vpop.f32.mrb[0].mxu0
        %v1067 = vadd.f32 0.0, %v1066
        %v1068 = vpop.f32.mrb[0].mxu0
        %1069 = vmatprep.mubr.f32.mxu0 %v972
        %1070 = vmatmul.mubr.f32.gmra.mrb[0].mxu0 %v971
        %v1071 = vpop.f32.mrb[0].mxu0
        %v1072 = vadd.f32 0.0, %v1071
        %v1073 = vpop.f32.mrb[0].mxu0
        %1074 = vmatprep.mubr.f32.mxu0 %v975
        %1075 = vmatmul.mubr.f32.gmra.mrb[0].mxu0 %v974
        %v1076 = vpop.f32.mrb[0].mxu0
        %v1077 = vadd.f32 0.0, %v1076
        %v1078 = vpop.f32.mrb[0].mxu0
        %1079 = vmatprep.mubr.f32.mxu0 %v978
        %1080 = vmatmul.mubr.f32.gmra.mrb[0].mxu0 %v977
        %v1081 = vpop.f32.mrb[0].mxu0
        %v1082 = vadd.f32 0.0, %v1081
        %v1083 = vpop.f32.mrb[0].mxu0
        %1084 = vdwg.mxu0
        %1085 = vmatprep.subr.mxu0 0.0
        %1086 = vmatpush1.msra.mxu0 %v199
        %1087 = vmatprep.subr.mxu0 0.0
        %1088 = vmatpush1.msra.mxu0 %v200
        %1089 = vmatprep.subr.mxu0 0.0
        %1090 = vmatpush1.msra.mxu0 %v201
        %1091 = vmatprep.subr.mxu0 0.0
        %1092 = vmatpush1.msra.mxu0 %v202
        %1093 = vmatprep.subr.mxu0 0.0
        %1094 = vmatpush1.msra.mxu0 %v203
        %1095 = vmatprep.subr.mxu0 0.0
        %1096 = vmatpush1.msra.mxu0 %v204
        %1097 = vmatprep.subr.mxu0 0.0
        %1098 = vmatpush1.msra.mxu0 %v205
        %1099 = vmatprep.subr.mxu0 0.0
        %1100 = vmatpush1.msra.mxu0 %v206
        %1101 = vmatprep.subr.mxu0 0.0
        %1102 = vmatpush1.msra.mxu0 %v207
        %1103 = vmatprep.subr.mxu0 0.0
        %1104 = vmatpush1.msra.mxu0 %v208
        %1105 = vmatprep.subr.mxu0 0.0
        %1106 = vmatpush1.msra.mxu0 %v209
        %1107 = vmatprep.subr.mxu0 0.0
        %1108 = vmatpush1.msra.mxu0 %v210
        %1109 = vmatprep.subr.mxu0 0.0
        %1110 = vmatpush1.msra.mxu0 %v211
        %1111 = vmatprep.subr.mxu0 0.0
        %1112 = vmatpush1.msra.mxu0 %v212
        %1113 = vmatprep.subr.mxu0 0.0
        %1114 = vmatpush1.msra.mxu0 %v213
        %1115 = vmatprep.subr.mxu0 0.0
        %1116 = vmatpush1.msra.mxu0 %v214
        %1117 = vmatprep.subr.mxu0 0.0
        %1118 = vmatpush1.msra.mxu0 0.0
        %1119 = vmatprep.subr.mxu0 0.0
        %1120 = vmatpush1.msra.mxu0 0.0
        %1121 = vmatprep.subr.mxu0 0.0
        %1122 = vmatpush1.msra.mxu0 0.0
        %1123 = vmatprep.subr.mxu0 0.0
        %1124 = vmatpush1.msra.mxu0 0.0
        %1125 = vmatprep.subr.mxu0 0.0
        %1126 = vmatpush1.msra.mxu0 0.0
        %1127 = vmatprep.subr.mxu0 0.0
        %1128 = vmatpush1.msra.mxu0 0.0
        %1129 = vmatprep.subr.mxu0 0.0
        %1130 = vmatpush1.msra.mxu0 0.0
        %1131 = vmatprep.subr.mxu0 0.0
        %1132 = vmatpush1.msra.mxu0 0.0
        %1133 = vmatprep.subr.mxu0 0.0
        %1134 = vmatpush1.msra.mxu0 0.0
        %1135 = vmatprep.subr.mxu0 0.0
        %1136 = vmatpush1.msra.mxu0 0.0
        %1137 = vmatprep.subr.mxu0 0.0
        %1138 = vmatpush1.msra.mxu0 0.0
        %1139 = vmatprep.subr.mxu0 0.0
        %1140 = vmatpush1.msra.mxu0 0.0
        %1141 = vmatprep.subr.mxu0 0.0
        %1142 = vmatpush1.msra.mxu0 0.0
        %1143 = vmatprep.subr.mxu0 0.0
        %1144 = vmatpush1.msra.mxu0 0.0
        %1145 = vmatprep.subr.mxu0 0.0
        %1146 = vmatpush1.msra.mxu0 0.0
        %1147 = vmatprep.subr.mxu0 0.0
        %1148 = vmatpush1.msra.mxu0 0.0
        %1149 = vmatprep.mubr.f32.mxu0 0.0
        %1150 = vmatmul.mubr.f32.gmra.mrb[0].mxu0 %v958
        %v1151 = vpop.f32.mrb[0].mxu0
        %v1152 = vadd.f32 %v1047, %v1151
        %v1153 = vpop.f32.mrb[0].mxu0
        %1154 = vmatprep.mubr.f32.mxu0 0.0
        %1155 = vmatmul.mubr.f32.gmra.mrb[0].mxu0 %v961
        %v1156 = vpop.f32.mrb[0].mxu0
        %v1157 = vadd.f32 %v1052, %v1156
        %v1158 = vpop.f32.mrb[0].mxu0
        %1159 = vmatprep.mubr.f32.mxu0 0.0
        %1160 = vmatmul.mubr.f32.gmra.mrb[0].mxu0 %v964
        %v1161 = vpop.f32.mrb[0].mxu0
        %v1162 = vadd.f32 %v1057, %v1161
        %v1163 = vpop.f32.mrb[0].mxu0
        %1164 = vmatprep.mubr.f32.mxu0 0.0
        %1165 = vmatmul.mubr.f32.gmra.mrb[0].mxu0 %v967
        %v1166 = vpop.f32.mrb[0].mxu0
        %v1167 = vadd.f32 %v1062, %v1166
        %v1168 = vpop.f32.mrb[0].mxu0
        %1169 = vmatprep.mubr.f32.mxu0 0.0
        %1170 = vmatmul.mubr.f32.gmra.mrb[0].mxu0 %v970
        %v1171 = vpop.f32.mrb[0].mxu0
        %v1172 = vadd.f32 %v1067, %v1171
        %v1173 = vpop.f32.mrb[0].mxu0
        %1174 = vmatprep.mubr.f32.mxu0 0.0
        %1175 = vmatmul.mubr.f32.gmra.mrb[0].mxu0 %v973
        %v1176 = vpop.f32.mrb[0].mxu0
        %v1177 = vadd.f32 %v1072, %v1176
        %v1178 = vpop.f32.mrb[0].mxu0
        %1179 = vmatprep.mubr.f32.mxu0 0.0
        %1180 = vmatmul.mubr.f32.gmra.mrb[0].mxu0 %v976
        %v1181 = vpop.f32.mrb[0].mxu0
        %v1182 = vadd.f32 %v1077, %v1181
        %v1183 = vpop.f32.mrb[0].mxu0
        %1184 = vmatprep.mubr.f32.mxu0 0.0
        %1185 = vmatmul.mubr.f32.gmra.mrb[0].mxu0 %v979
        %v1186 = vpop.f32.mrb[0].mxu0
        %v1187 = vadd.f32 %v1082, %v1186
        %v1188 = vpop.f32.mrb[0].mxu0
        %1189 = vdwg.mxu0
        %s1190 = scalar_lea.vmem %s165, 192
        %1191 = vst.msk [vmem:[%s1190] sm:$0xff] %vm452, %v1152
        %1192 = vst.msk [vmem:[%s1190 + $0x8] sm:$0xff] %vm452, %v1157
        %1193 = vst.msk [vmem:[%s1190 + $0x10] sm:$0xff] %vm452, %v1162
        %1194 = vst.msk [vmem:[%s1190 + $0x18] sm:$0xff] %vm452, %v1167
        %1195 = vst.msk [vmem:[%s1190 + $0x20] sm:$0xff] %vm452, %v1172
        %1196 = vst.msk [vmem:[%s1190 + $0x28] sm:$0xff] %vm452, %v1177
        %1197 = vst.msk [vmem:[%s1190 + $0x30] sm:$0xff] %vm452, %v1182
        %1198 = vst.msk [vmem:[%s1190 + $0x38] sm:$0xff] %vm452, %v1187
        %s1199 = smul.u32 32, 3
        %s1200 = smul.addr %s1199, 8
        %s1201 = scalar_lea.vmem %s139, %s1200 [#allocation2]
        %v1202 = vld [vmem:[%s1201] sm:$0xff]
        %v1203 = vld [vmem:[%s1201 + $0x8] sm:$0xff]
        %v1204 = vld [vmem:[%s1201 + $0x10] sm:$0xff]
        %v1205 = vld [vmem:[%s1201 + $0x18] sm:$0xff]
        %v1206 = vld [vmem:[%s1201 + $0x20] sm:$0xff]
        %v1207 = vld [vmem:[%s1201 + $0x28] sm:$0xff]
        %v1208 = vld [vmem:[%s1201 + $0x30] sm:$0xff]
        %v1209 = vld [vmem:[%s1201 + $0x38] sm:$0xff]
        %v1210 = vld [vmem:[%s1201 + $0x40] sm:$0xff]
        %v1211 = vld [vmem:[%s1201 + $0x48] sm:$0xff]
        %v1212 = vld [vmem:[%s1201 + $0x50] sm:$0xff]
        %v1213 = vld [vmem:[%s1201 + $0x58] sm:$0xff]
        %v1214 = vld [vmem:[%s1201 + $0x60] sm:$0xff]
        %v1215 = vld [vmem:[%s1201 + $0x68] sm:$0xff]
        %v1216 = vld [vmem:[%s1201 + $0x70] sm:$0xff]
        %v1217 = vld [vmem:[%s1201 + $0x78] sm:$0xff]
        %v1218 = vld [vmem:[%s1201 + $0x80] sm:$0xff]
        %v1219 = vld [vmem:[%s1201 + $0x88] sm:$0xff]
        %v1220 = vld [vmem:[%s1201 + $0x90] sm:$0xff]
        %v1221 = vld [vmem:[%s1201 + $0x98] sm:$0xff]
        %v1222 = vld [vmem:[%s1201 + $0xa0] sm:$0xff]
        %v1223 = vld [vmem:[%s1201 + $0xa8] sm:$0xff]
        %v1224 = vld [vmem:[%s1201 + $0xb0] sm:$0xff]
        %v1225 = vld [vmem:[%s1201 + $0xb8] sm:$0xff]
        %1226 = vmatprep.subr.mxu0 0.0
        %1227 = vmatpush1.msra.mxu0 %v167
        %1228 = vmatprep.subr.mxu0 0.0
        %1229 = vmatpush1.msra.mxu0 %v168
        %1230 = vmatprep.subr.mxu0 0.0
        %1231 = vmatpush1.msra.mxu0 %v169
        %1232 = vmatprep.subr.mxu0 0.0
        %1233 = vmatpush1.msra.mxu0 %v170
        %1234 = vmatprep.subr.mxu0 0.0
        %1235 = vmatpush1.msra.mxu0 %v171
        %1236 = vmatprep.subr.mxu0 0.0
        %1237 = vmatpush1.msra.mxu0 %v172
        %1238 = vmatprep.subr.mxu0 0.0
        %1239 = vmatpush1.msra.mxu0 %v173
        %1240 = vmatprep.subr.mxu0 0.0
        %1241 = vmatpush1.msra.mxu0 %v174
        %1242 = vmatprep.subr.mxu0 0.0
        %1243 = vmatpush1.msra.mxu0 %v175
        %1244 = vmatprep.subr.mxu0 0.0
        %1245 = vmatpush1.msra.mxu0 %v176
        %1246 = vmatprep.subr.mxu0 0.0
        %1247 = vmatpush1.msra.mxu0 %v177
        %1248 = vmatprep.subr.mxu0 0.0
        %1249 = vmatpush1.msra.mxu0 %v178
        %1250 = vmatprep.subr.mxu0 0.0
        %1251 = vmatpush1.msra.mxu0 %v179
        %1252 = vmatprep.subr.mxu0 0.0
        %1253 = vmatpush1.msra.mxu0 %v180
        %1254 = vmatprep.subr.mxu0 0.0
        %1255 = vmatpush1.msra.mxu0 %v181
        %1256 = vmatprep.subr.mxu0 0.0
        %1257 = vmatpush1.msra.mxu0 %v182
        %1258 = vmatprep.subr.mxu0 0.0
        %1259 = vmatpush1.msra.mxu0 %v183
        %1260 = vmatprep.subr.mxu0 0.0
        %1261 = vmatpush1.msra.mxu0 %v184
        %1262 = vmatprep.subr.mxu0 0.0
        %1263 = vmatpush1.msra.mxu0 %v185
        %1264 = vmatprep.subr.mxu0 0.0
        %1265 = vmatpush1.msra.mxu0 %v186
        %1266 = vmatprep.subr.mxu0 0.0
        %1267 = vmatpush1.msra.mxu0 %v187
        %1268 = vmatprep.subr.mxu0 0.0
        %1269 = vmatpush1.msra.mxu0 %v188
        %1270 = vmatprep.subr.mxu0 0.0
        %1271 = vmatpush1.msra.mxu0 %v189
        %1272 = vmatprep.subr.mxu0 0.0
        %1273 = vmatpush1.msra.mxu0 %v190
        %1274 = vmatprep.subr.mxu0 0.0
        %1275 = vmatpush1.msra.mxu0 %v191
        %1276 = vmatprep.subr.mxu0 0.0
        %1277 = vmatpush1.msra.mxu0 %v192
        %1278 = vmatprep.subr.mxu0 0.0
        %1279 = vmatpush1.msra.mxu0 %v193
        %1280 = vmatprep.subr.mxu0 0.0
        %1281 = vmatpush1.msra.mxu0 %v194
        %1282 = vmatprep.subr.mxu0 0.0
        %1283 = vmatpush1.msra.mxu0 %v195
        %1284 = vmatprep.subr.mxu0 0.0
        %1285 = vmatpush1.msra.mxu0 %v196
        %1286 = vmatprep.subr.mxu0 0.0
        %1287 = vmatpush1.msra.mxu0 %v197
        %1288 = vmatprep.subr.mxu0 0.0
        %1289 = vmatpush1.msra.mxu0 %v198
        %1290 = vmatprep.mubr.f32.mxu0 %v1203
        %1291 = vmatmul.mubr.f32.gmra.mrb[0].mxu0 %v1202
        %v1292 = vpop.f32.mrb[0].mxu0
        %v1293 = vadd.f32 0.0, %v1292
        %v1294 = vpop.f32.mrb[0].mxu0
        %1295 = vmatprep.mubr.f32.mxu0 %v1206
        %1296 = vmatmul.mubr.f32.gmra.mrb[0].mxu0 %v1205
        %v1297 = vpop.f32.mrb[0].mxu0
        %v1298 = vadd.f32 0.0, %v1297
        %v1299 = vpop.f32.mrb[0].mxu0
        %1300 = vmatprep.mubr.f32.mxu0 %v1209
        %1301 = vmatmul.mubr.f32.gmra.mrb[0].mxu0 %v1208
        %v1302 = vpop.f32.mrb[0].mxu0
        %v1303 = vadd.f32 0.0, %v1302
        %v1304 = vpop.f32.mrb[0].mxu0
        %1305 = vmatprep.mubr.f32.mxu0 %v1212
        %1306 = vmatmul.mubr.f32.gmra.mrb[0].mxu0 %v1211
        %v1307 = vpop.f32.mrb[0].mxu0
        %v1308 = vadd.f32 0.0, %v1307
        %v1309 = vpop.f32.mrb[0].mxu0
        %1310 = vmatprep.mubr.f32.mxu0 %v1215
        %1311 = vmatmul.mubr.f32.gmra.mrb[0].mxu0 %v1214
        %v1312 = vpop.f32.mrb[0].mxu0
        %v1313 = vadd.f32 0.0, %v1312
        %v1314 = vpop.f32.mrb[0].mxu0
        %1315 = vmatprep.mubr.f32.mxu0 %v1218
        %1316 = vmatmul.mubr.f32.gmra.mrb[0].mxu0 %v1217
        %v1317 = vpop.f32.mrb[0].mxu0
        %v1318 = vadd.f32 0.0, %v1317
        %v1319 = vpop.f32.mrb[0].mxu0
        %1320 = vmatprep.mubr.f32.mxu0 %v1221
        %1321 = vmatmul.mubr.f32.gmra.mrb[0].mxu0 %v1220
        %v1322 = vpop.f32.mrb[0].mxu0
        %v1323 = vadd.f32 0.0, %v1322
        %v1324 = vpop.f32.mrb[0].mxu0
        %1325 = vmatprep.mubr.f32.mxu0 %v1224
        %1326 = vmatmul.mubr.f32.gmra.mrb[0].mxu0 %v1223
        %v1327 = vpop.f32.mrb[0].mxu0
        %v1328 = vadd.f32 0.0, %v1327
        %v1329 = vpop.f32.mrb[0].mxu0
        %1330 = vdwg.mxu0
        %1331 = vmatprep.subr.mxu0 0.0
        %1332 = vmatpush1.msra.mxu0 %v199
        %1333 = vmatprep.subr.mxu0 0.0
        %1334 = vmatpush1.msra.mxu0 %v200
        %1335 = vmatprep.subr.mxu0 0.0
        %1336 = vmatpush1.msra.mxu0 %v201
        %1337 = vmatprep.subr.mxu0 0.0
        %1338 = vmatpush1.msra.mxu0 %v202
        %1339 = vmatprep.subr.mxu0 0.0
        %1340 = vmatpush1.msra.mxu0 %v203
        %1341 = vmatprep.subr.mxu0 0.0
        %1342 = vmatpush1.msra.mxu0 %v204
        %1343 = vmatprep.subr.mxu0 0.0
        %1344 = vmatpush1.msra.mxu0 %v205
        %1345 = vmatprep.subr.mxu0 0.0
        %1346 = vmatpush1.msra.mxu0 %v206
        %1347 = vmatprep.subr.mxu0 0.0
        %1348 = vmatpush1.msra.mxu0 %v207
        %1349 = vmatprep.subr.mxu0 0.0
        %1350 = vmatpush1.msra.mxu0 %v208
        %1351 = vmatprep.subr.mxu0 0.0
        %1352 = vmatpush1.msra.mxu0 %v209
        %1353 = vmatprep.subr.mxu0 0.0
        %1354 = vmatpush1.msra.mxu0 %v210
        %1355 = vmatprep.subr.mxu0 0.0
        %1356 = vmatpush1.msra.mxu0 %v211
        %1357 = vmatprep.subr.mxu0 0.0
        %1358 = vmatpush1.msra.mxu0 %v212
        %1359 = vmatprep.subr.mxu0 0.0
        %1360 = vmatpush1.msra.mxu0 %v213
        %1361 = vmatprep.subr.mxu0 0.0
        %1362 = vmatpush1.msra.mxu0 %v214
        %1363 = vmatprep.subr.mxu0 0.0
        %1364 = vmatpush1.msra.mxu0 0.0
        %1365 = vmatprep.subr.mxu0 0.0
        %1366 = vmatpush1.msra.mxu0 0.0
        %1367 = vmatprep.subr.mxu0 0.0
        %1368 = vmatpush1.msra.mxu0 0.0
        %1369 = vmatprep.subr.mxu0 0.0
        %1370 = vmatpush1.msra.mxu0 0.0
        %1371 = vmatprep.subr.mxu0 0.0
        %1372 = vmatpush1.msra.mxu0 0.0
        %1373 = vmatprep.subr.mxu0 0.0
        %1374 = vmatpush1.msra.mxu0 0.0
        %1375 = vmatprep.subr.mxu0 0.0
        %1376 = vmatpush1.msra.mxu0 0.0
        %1377 = vmatprep.subr.mxu0 0.0
        %1378 = vmatpush1.msra.mxu0 0.0
        %1379 = vmatprep.subr.mxu0 0.0
        %1380 = vmatpush1.msra.mxu0 0.0
        %1381 = vmatprep.subr.mxu0 0.0
        %1382 = vmatpush1.msra.mxu0 0.0
        %1383 = vmatprep.subr.mxu0 0.0
        %1384 = vmatpush1.msra.mxu0 0.0
        %1385 = vmatprep.subr.mxu0 0.0
        %1386 = vmatpush1.msra.mxu0 0.0
        %1387 = vmatprep.subr.mxu0 0.0
        %1388 = vmatpush1.msra.mxu0 0.0
        %1389 = vmatprep.subr.mxu0 0.0
        %1390 = vmatpush1.msra.mxu0 0.0
        %1391 = vmatprep.subr.mxu0 0.0
        %1392 = vmatpush1.msra.mxu0 0.0
        %1393 = vmatprep.subr.mxu0 0.0
        %1394 = vmatpush1.msra.mxu0 0.0
        %1395 = vmatprep.mubr.f32.mxu0 0.0
        %1396 = vmatmul.mubr.f32.gmra.mrb[0].mxu0 %v1204
        %v1397 = vpop.f32.mrb[0].mxu0
        %v1398 = vadd.f32 %v1293, %v1397
        %v1399 = vpop.f32.mrb[0].mxu0
        %1400 = vmatprep.mubr.f32.mxu0 0.0
        %1401 = vmatmul.mubr.f32.gmra.mrb[0].mxu0 %v1207
        %v1402 = vpop.f32.mrb[0].mxu0
        %v1403 = vadd.f32 %v1298, %v1402
        %v1404 = vpop.f32.mrb[0].mxu0
        %1405 = vmatprep.mubr.f32.mxu0 0.0
        %1406 = vmatmul.mubr.f32.gmra.mrb[0].mxu0 %v1210
        %v1407 = vpop.f32.mrb[0].mxu0
        %v1408 = vadd.f32 %v1303, %v1407
        %v1409 = vpop.f32.mrb[0].mxu0
        %1410 = vmatprep.mubr.f32.mxu0 0.0
        %1411 = vmatmul.mubr.f32.gmra.mrb[0].mxu0 %v1213
        %v1412 = vpop.f32.mrb[0].mxu0
        %v1413 = vadd.f32 %v1308, %v1412
        %v1414 = vpop.f32.mrb[0].mxu0
        %1415 = vmatprep.mubr.f32.mxu0 0.0
        %1416 = vmatmul.mubr.f32.gmra.mrb[0].mxu0 %v1216
        %v1417 = vpop.f32.mrb[0].mxu0
        %v1418 = vadd.f32 %v1313, %v1417
        %v1419 = vpop.f32.mrb[0].mxu0
        %1420 = vmatprep.mubr.f32.mxu0 0.0
        %1421 = vmatmul.mubr.f32.gmra.mrb[0].mxu0 %v1219
        %v1422 = vpop.f32.mrb[0].mxu0
        %v1423 = vadd.f32 %v1318, %v1422
        %v1424 = vpop.f32.mrb[0].mxu0
        %1425 = vmatprep.mubr.f32.mxu0 0.0
        %1426 = vmatmul.mubr.f32.gmra.mrb[0].mxu0 %v1222
        %v1427 = vpop.f32.mrb[0].mxu0
        %v1428 = vadd.f32 %v1323, %v1427
        %v1429 = vpop.f32.mrb[0].mxu0
        %1430 = vmatprep.mubr.f32.mxu0 0.0
        %1431 = vmatmul.mubr.f32.gmra.mrb[0].mxu0 %v1225
        %v1432 = vpop.f32.mrb[0].mxu0
        %v1433 = vadd.f32 %v1328, %v1432
        %v1434 = vpop.f32.mrb[0].mxu0
        %1435 = vdwg.mxu0
        %s1436 = scalar_lea.vmem %s165, 256
        %1437 = vst.msk [vmem:[%s1436] sm:$0xff] %vm452, %v1398
        %1438 = vst.msk [vmem:[%s1436 + $0x8] sm:$0xff] %vm452, %v1403
        %1439 = vst.msk [vmem:[%s1436 + $0x10] sm:$0xff] %vm452, %v1408
        %1440 = vst.msk [vmem:[%s1436 + $0x18] sm:$0xff] %vm452, %v1413
        %1441 = vst.msk [vmem:[%s1436 + $0x20] sm:$0xff] %vm452, %v1418
        %1442 = vst.msk [vmem:[%s1436 + $0x28] sm:$0xff] %vm452, %v1423
        %1443 = vst.msk [vmem:[%s1436 + $0x30] sm:$0xff] %vm452, %v1428
        %1444 = vst.msk [vmem:[%s1436 + $0x38] sm:$0xff] %vm452, %v1433
        %s1445 = smul.u32 40, 3
        %s1446 = smul.addr %s1445, 8
        %s1447 = scalar_lea.vmem %s139, %s1446 [#allocation2]
        %v1448 = vld [vmem:[%s1447] sm:$0xff]
        %v1449 = vld [vmem:[%s1447 + $0x8] sm:$0xff]
        %v1450 = vld [vmem:[%s1447 + $0x10] sm:$0xff]
        %v1451 = vld [vmem:[%s1447 + $0x18] sm:$0xff]
        %v1452 = vld [vmem:[%s1447 + $0x20] sm:$0xff]
        %v1453 = vld [vmem:[%s1447 + $0x28] sm:$0xff]
        %v1454 = vld [vmem:[%s1447 + $0x30] sm:$0xff]
        %v1455 = vld [vmem:[%s1447 + $0x38] sm:$0xff]
        %v1456 = vld [vmem:[%s1447 + $0x40] sm:$0xff]
        %v1457 = vld [vmem:[%s1447 + $0x48] sm:$0xff]
        %v1458 = vld [vmem:[%s1447 + $0x50] sm:$0xff]
        %v1459 = vld [vmem:[%s1447 + $0x58] sm:$0xff]
        %v1460 = vld [vmem:[%s1447 + $0x60] sm:$0xff]
        %v1461 = vld [vmem:[%s1447 + $0x68] sm:$0xff]
        %v1462 = vld [vmem:[%s1447 + $0x70] sm:$0xff]
        %v1463 = vld [vmem:[%s1447 + $0x78] sm:$0xff]
        %v1464 = vld [vmem:[%s1447 + $0x80] sm:$0xff]
        %v1465 = vld [vmem:[%s1447 + $0x88] sm:$0xff]
        %v1466 = vld [vmem:[%s1447 + $0x90] sm:$0xff]
        %v1467 = vld [vmem:[%s1447 + $0x98] sm:$0xff]
        %v1468 = vld [vmem:[%s1447 + $0xa0] sm:$0xff]
        %v1469 = vld [vmem:[%s1447 + $0xa8] sm:$0xff]
        %v1470 = vld [vmem:[%s1447 + $0xb0] sm:$0xff]
        %v1471 = vld [vmem:[%s1447 + $0xb8] sm:$0xff]
        %1472 = vmatprep.subr.mxu0 0.0
        %1473 = vmatpush1.msra.mxu0 %v167
        %1474 = vmatprep.subr.mxu0 0.0
        %1475 = vmatpush1.msra.mxu0 %v168
        %1476 = vmatprep.subr.mxu0 0.0
        %1477 = vmatpush1.msra.mxu0 %v169
        %1478 = vmatprep.subr.mxu0 0.0
        %1479 = vmatpush1.msra.mxu0 %v170
        %1480 = vmatprep.subr.mxu0 0.0
        %1481 = vmatpush1.msra.mxu0 %v171
        %1482 = vmatprep.subr.mxu0 0.0
        %1483 = vmatpush1.msra.mxu0 %v172
        %1484 = vmatprep.subr.mxu0 0.0
        %1485 = vmatpush1.msra.mxu0 %v173
        %1486 = vmatprep.subr.mxu0 0.0
        %1487 = vmatpush1.msra.mxu0 %v174
        %1488 = vmatprep.subr.mxu0 0.0
        %1489 = vmatpush1.msra.mxu0 %v175
        %1490 = vmatprep.subr.mxu0 0.0
        %1491 = vmatpush1.msra.mxu0 %v176
        %1492 = vmatprep.subr.mxu0 0.0
        %1493 = vmatpush1.msra.mxu0 %v177
        %1494 = vmatprep.subr.mxu0 0.0
        %1495 = vmatpush1.msra.mxu0 %v178
        %1496 = vmatprep.subr.mxu0 0.0
        %1497 = vmatpush1.msra.mxu0 %v179
        %1498 = vmatprep.subr.mxu0 0.0
        %1499 = vmatpush1.msra.mxu0 %v180
        %1500 = vmatprep.subr.mxu0 0.0
        %1501 = vmatpush1.msra.mxu0 %v181
        %1502 = vmatprep.subr.mxu0 0.0
        %1503 = vmatpush1.msra.mxu0 %v182
        %1504 = vmatprep.subr.mxu0 0.0
        %1505 = vmatpush1.msra.mxu0 %v183
        %1506 = vmatprep.subr.mxu0 0.0
        %1507 = vmatpush1.msra.mxu0 %v184
        %1508 = vmatprep.subr.mxu0 0.0
        %1509 = vmatpush1.msra.mxu0 %v185
        %1510 = vmatprep.subr.mxu0 0.0
        %1511 = vmatpush1.msra.mxu0 %v186
        %1512 = vmatprep.subr.mxu0 0.0
        %1513 = vmatpush1.msra.mxu0 %v187
        %1514 = vmatprep.subr.mxu0 0.0
        %1515 = vmatpush1.msra.mxu0 %v188
        %1516 = vmatprep.subr.mxu0 0.0
        %1517 = vmatpush1.msra.mxu0 %v189
        %1518 = vmatprep.subr.mxu0 0.0
        %1519 = vmatpush1.msra.mxu0 %v190
        %1520 = vmatprep.subr.mxu0 0.0
        %1521 = vmatpush1.msra.mxu0 %v191
        %1522 = vmatprep.subr.mxu0 0.0
        %1523 = vmatpush1.msra.mxu0 %v192
        %1524 = vmatprep.subr.mxu0 0.0
        %1525 = vmatpush1.msra.mxu0 %v193
        %1526 = vmatprep.subr.mxu0 0.0
        %1527 = vmatpush1.msra.mxu0 %v194
        %1528 = vmatprep.subr.mxu0 0.0
        %1529 = vmatpush1.msra.mxu0 %v195
        %1530 = vmatprep.subr.mxu0 0.0
        %1531 = vmatpush1.msra.mxu0 %v196
        %1532 = vmatprep.subr.mxu0 0.0
        %1533 = vmatpush1.msra.mxu0 %v197
        %1534 = vmatprep.subr.mxu0 0.0
        %1535 = vmatpush1.msra.mxu0 %v198
        %1536 = vmatprep.mubr.f32.mxu0 %v1449
        %1537 = vmatmul.mubr.f32.gmra.mrb[0].mxu0 %v1448
        %v1538 = vpop.f32.mrb[0].mxu0
        %v1539 = vadd.f32 0.0, %v1538
        %v1540 = vpop.f32.mrb[0].mxu0
        %1541 = vmatprep.mubr.f32.mxu0 %v1452
        %1542 = vmatmul.mubr.f32.gmra.mrb[0].mxu0 %v1451
        %v1543 = vpop.f32.mrb[0].mxu0
        %v1544 = vadd.f32 0.0, %v1543
        %v1545 = vpop.f32.mrb[0].mxu0
        %1546 = vmatprep.mubr.f32.mxu0 %v1455
        %1547 = vmatmul.mubr.f32.gmra.mrb[0].mxu0 %v1454
        %v1548 = vpop.f32.mrb[0].mxu0
        %v1549 = vadd.f32 0.0, %v1548
        %v1550 = vpop.f32.mrb[0].mxu0
        %1551 = vmatprep.mubr.f32.mxu0 %v1458
        %1552 = vmatmul.mubr.f32.gmra.mrb[0].mxu0 %v1457
        %v1553 = vpop.f32.mrb[0].mxu0
        %v1554 = vadd.f32 0.0, %v1553
        %v1555 = vpop.f32.mrb[0].mxu0
        %1556 = vmatprep.mubr.f32.mxu0 %v1461
        %1557 = vmatmul.mubr.f32.gmra.mrb[0].mxu0 %v1460
        %v1558 = vpop.f32.mrb[0].mxu0
        %v1559 = vadd.f32 0.0, %v1558
        %v1560 = vpop.f32.mrb[0].mxu0
        %1561 = vmatprep.mubr.f32.mxu0 %v1464
        %1562 = vmatmul.mubr.f32.gmra.mrb[0].mxu0 %v1463
        %v1563 = vpop.f32.mrb[0].mxu0
        %v1564 = vadd.f32 0.0, %v1563
        %v1565 = vpop.f32.mrb[0].mxu0
        %1566 = vmatprep.mubr.f32.mxu0 %v1467
        %1567 = vmatmul.mubr.f32.gmra.mrb[0].mxu0 %v1466
        %v1568 = vpop.f32.mrb[0].mxu0
        %v1569 = vadd.f32 0.0, %v1568
        %v1570 = vpop.f32.mrb[0].mxu0
        %1571 = vmatprep.mubr.f32.mxu0 %v1470
        %1572 = vmatmul.mubr.f32.gmra.mrb[0].mxu0 %v1469
        %v1573 = vpop.f32.mrb[0].mxu0
        %v1574 = vadd.f32 0.0, %v1573
        %v1575 = vpop.f32.mrb[0].mxu0
        %1576 = vdwg.mxu0
        %1577 = vmatprep.subr.mxu0 0.0
        %1578 = vmatpush1.msra.mxu0 %v199
        %1579 = vmatprep.subr.mxu0 0.0
        %1580 = vmatpush1.msra.mxu0 %v200
        %1581 = vmatprep.subr.mxu0 0.0
        %1582 = vmatpush1.msra.mxu0 %v201
        %1583 = vmatprep.subr.mxu0 0.0
        %1584 = vmatpush1.msra.mxu0 %v202
        %1585 = vmatprep.subr.mxu0 0.0
        %1586 = vmatpush1.msra.mxu0 %v203
        %1587 = vmatprep.subr.mxu0 0.0
        %1588 = vmatpush1.msra.mxu0 %v204
        %1589 = vmatprep.subr.mxu0 0.0
        %1590 = vmatpush1.msra.mxu0 %v205
        %1591 = vmatprep.subr.mxu0 0.0
        %1592 = vmatpush1.msra.mxu0 %v206
        %1593 = vmatprep.subr.mxu0 0.0
        %1594 = vmatpush1.msra.mxu0 %v207
        %1595 = vmatprep.subr.mxu0 0.0
        %1596 = vmatpush1.msra.mxu0 %v208
        %1597 = vmatprep.subr.mxu0 0.0
        %1598 = vmatpush1.msra.mxu0 %v209
        %1599 = vmatprep.subr.mxu0 0.0
        %1600 = vmatpush1.msra.mxu0 %v210
        %1601 = vmatprep.subr.mxu0 0.0
        %1602 = vmatpush1.msra.mxu0 %v211
        %1603 = vmatprep.subr.mxu0 0.0
        %1604 = vmatpush1.msra.mxu0 %v212
        %1605 = vmatprep.subr.mxu0 0.0
        %1606 = vmatpush1.msra.mxu0 %v213
        %1607 = vmatprep.subr.mxu0 0.0
        %1608 = vmatpush1.msra.mxu0 %v214
        %1609 = vmatprep.subr.mxu0 0.0
        %1610 = vmatpush1.msra.mxu0 0.0
        %1611 = vmatprep.subr.mxu0 0.0
        %1612 = vmatpush1.msra.mxu0 0.0
        %1613 = vmatprep.subr.mxu0 0.0
        %1614 = vmatpush1.msra.mxu0 0.0
        %1615 = vmatprep.subr.mxu0 0.0
        %1616 = vmatpush1.msra.mxu0 0.0
        %1617 = vmatprep.subr.mxu0 0.0
        %1618 = vmatpush1.msra.mxu0 0.0
        %1619 = vmatprep.subr.mxu0 0.0
        %1620 = vmatpush1.msra.mxu0 0.0
        %1621 = vmatprep.subr.mxu0 0.0
        %1622 = vmatpush1.msra.mxu0 0.0
        %1623 = vmatprep.subr.mxu0 0.0
        %1624 = vmatpush1.msra.mxu0 0.0
        %1625 = vmatprep.subr.mxu0 0.0
        %1626 = vmatpush1.msra.mxu0 0.0
        %1627 = vmatprep.subr.mxu0 0.0
        %1628 = vmatpush1.msra.mxu0 0.0
        %1629 = vmatprep.subr.mxu0 0.0
        %1630 = vmatpush1.msra.mxu0 0.0
        %1631 = vmatprep.subr.mxu0 0.0
        %1632 = vmatpush1.msra.mxu0 0.0
        %1633 = vmatprep.subr.mxu0 0.0
        %1634 = vmatpush1.msra.mxu0 0.0
        %1635 = vmatprep.subr.mxu0 0.0
        %1636 = vmatpush1.msra.mxu0 0.0
        %1637 = vmatprep.subr.mxu0 0.0
        %1638 = vmatpush1.msra.mxu0 0.0
        %1639 = vmatprep.subr.mxu0 0.0
        %1640 = vmatpush1.msra.mxu0 0.0
        %1641 = vmatprep.mubr.f32.mxu0 0.0
        %1642 = vmatmul.mubr.f32.gmra.mrb[0].mxu0 %v1450
        %v1643 = vpop.f32.mrb[0].mxu0
        %v1644 = vadd.f32 %v1539, %v1643
        %v1645 = vpop.f32.mrb[0].mxu0
        %1646 = vmatprep.mubr.f32.mxu0 0.0
        %1647 = vmatmul.mubr.f32.gmra.mrb[0].mxu0 %v1453
        %v1648 = vpop.f32.mrb[0].mxu0
        %v1649 = vadd.f32 %v1544, %v1648
        %v1650 = vpop.f32.mrb[0].mxu0
        %1651 = vmatprep.mubr.f32.mxu0 0.0
        %1652 = vmatmul.mubr.f32.gmra.mrb[0].mxu0 %v1456
        %v1653 = vpop.f32.mrb[0].mxu0
        %v1654 = vadd.f32 %v1549, %v1653
        %v1655 = vpop.f32.mrb[0].mxu0
        %1656 = vmatprep.mubr.f32.mxu0 0.0
        %1657 = vmatmul.mubr.f32.gmra.mrb[0].mxu0 %v1459
        %v1658 = vpop.f32.mrb[0].mxu0
        %v1659 = vadd.f32 %v1554, %v1658
        %v1660 = vpop.f32.mrb[0].mxu0
        %1661 = vmatprep.mubr.f32.mxu0 0.0
        %1662 = vmatmul.mubr.f32.gmra.mrb[0].mxu0 %v1462
        %v1663 = vpop.f32.mrb[0].mxu0
        %v1664 = vadd.f32 %v1559, %v1663
        %v1665 = vpop.f32.mrb[0].mxu0
        %1666 = vmatprep.mubr.f32.mxu0 0.0
        %1667 = vmatmul.mubr.f32.gmra.mrb[0].mxu0 %v1465
        %v1668 = vpop.f32.mrb[0].mxu0
        %v1669 = vadd.f32 %v1564, %v1668
        %v1670 = vpop.f32.mrb[0].mxu0
        %1671 = vmatprep.mubr.f32.mxu0 0.0
        %1672 = vmatmul.mubr.f32.gmra.mrb[0].mxu0 %v1468
        %v1673 = vpop.f32.mrb[0].mxu0
        %v1674 = vadd.f32 %v1569, %v1673
        %v1675 = vpop.f32.mrb[0].mxu0
        %1676 = vmatprep.mubr.f32.mxu0 0.0
        %1677 = vmatmul.mubr.f32.gmra.mrb[0].mxu0 %v1471
        %v1678 = vpop.f32.mrb[0].mxu0
        %v1679 = vadd.f32 %v1574, %v1678
        %v1680 = vpop.f32.mrb[0].mxu0
        %1681 = vdwg.mxu0
        %s1682 = scalar_lea.vmem %s165, 320
        %1683 = vst.msk [vmem:[%s1682] sm:$0xff] %vm452, %v1644
        %1684 = vst.msk [vmem:[%s1682 + $0x8] sm:$0xff] %vm452, %v1649
        %1685 = vst.msk [vmem:[%s1682 + $0x10] sm:$0xff] %vm452, %v1654
        %1686 = vst.msk [vmem:[%s1682 + $0x18] sm:$0xff] %vm452, %v1659
        %1687 = vst.msk [vmem:[%s1682 + $0x20] sm:$0xff] %vm452, %v1664
        %1688 = vst.msk [vmem:[%s1682 + $0x28] sm:$0xff] %vm452, %v1669
        %1689 = vst.msk [vmem:[%s1682 + $0x30] sm:$0xff] %vm452, %v1674
        %1690 = vst.msk [vmem:[%s1682 + $0x38] sm:$0xff] %vm452, %v1679
        %s1691 = smul.u32 48, 3
        %s1692 = smul.addr %s1691, 8
        %s1693 = scalar_lea.vmem %s139, %s1692 [#allocation2]
        %v1694 = vld [vmem:[%s1693] sm:$0xff]
        %v1695 = vld [vmem:[%s1693 + $0x8] sm:$0xff]
        %v1696 = vld [vmem:[%s1693 + $0x10] sm:$0xff]
        %v1697 = vld [vmem:[%s1693 + $0x18] sm:$0xff]
        %v1698 = vld [vmem:[%s1693 + $0x20] sm:$0xff]
        %v1699 = vld [vmem:[%s1693 + $0x28] sm:$0xff]
        %v1700 = vld [vmem:[%s1693 + $0x30] sm:$0xff]
        %v1701 = vld [vmem:[%s1693 + $0x38] sm:$0xff]
        %v1702 = vld [vmem:[%s1693 + $0x40] sm:$0xff]
        %v1703 = vld [vmem:[%s1693 + $0x48] sm:$0xff]
        %v1704 = vld [vmem:[%s1693 + $0x50] sm:$0xff]
        %v1705 = vld [vmem:[%s1693 + $0x58] sm:$0xff]
        %v1706 = vld [vmem:[%s1693 + $0x60] sm:$0xff]
        %v1707 = vld [vmem:[%s1693 + $0x68] sm:$0xff]
        %v1708 = vld [vmem:[%s1693 + $0x70] sm:$0xff]
        %v1709 = vld [vmem:[%s1693 + $0x78] sm:$0xff]
        %v1710 = vld [vmem:[%s1693 + $0x80] sm:$0xff]
        %v1711 = vld [vmem:[%s1693 + $0x88] sm:$0xff]
        %v1712 = vld [vmem:[%s1693 + $0x90] sm:$0xff]
        %v1713 = vld [vmem:[%s1693 + $0x98] sm:$0xff]
        %v1714 = vld [vmem:[%s1693 + $0xa0] sm:$0xff]
        %v1715 = vld [vmem:[%s1693 + $0xa8] sm:$0xff]
        %v1716 = vld [vmem:[%s1693 + $0xb0] sm:$0xff]
        %v1717 = vld [vmem:[%s1693 + $0xb8] sm:$0xff]
        %1718 = vmatprep.subr.mxu0 0.0
        %1719 = vmatpush1.msra.mxu0 %v167
        %1720 = vmatprep.subr.mxu0 0.0
        %1721 = vmatpush1.msra.mxu0 %v168
        %1722 = vmatprep.subr.mxu0 0.0
        %1723 = vmatpush1.msra.mxu0 %v169
        %1724 = vmatprep.subr.mxu0 0.0
        %1725 = vmatpush1.msra.mxu0 %v170
        %1726 = vmatprep.subr.mxu0 0.0
        %1727 = vmatpush1.msra.mxu0 %v171
        %1728 = vmatprep.subr.mxu0 0.0
        %1729 = vmatpush1.msra.mxu0 %v172
        %1730 = vmatprep.subr.mxu0 0.0
        %1731 = vmatpush1.msra.mxu0 %v173
        %1732 = vmatprep.subr.mxu0 0.0
        %1733 = vmatpush1.msra.mxu0 %v174
        %1734 = vmatprep.subr.mxu0 0.0
        %1735 = vmatpush1.msra.mxu0 %v175
        %1736 = vmatprep.subr.mxu0 0.0
        %1737 = vmatpush1.msra.mxu0 %v176
        %1738 = vmatprep.subr.mxu0 0.0
        %1739 = vmatpush1.msra.mxu0 %v177
        %1740 = vmatprep.subr.mxu0 0.0
        %1741 = vmatpush1.msra.mxu0 %v178
        %1742 = vmatprep.subr.mxu0 0.0
        %1743 = vmatpush1.msra.mxu0 %v179
        %1744 = vmatprep.subr.mxu0 0.0
        %1745 = vmatpush1.msra.mxu0 %v180
        %1746 = vmatprep.subr.mxu0 0.0
        %1747 = vmatpush1.msra.mxu0 %v181
        %1748 = vmatprep.subr.mxu0 0.0
        %1749 = vmatpush1.msra.mxu0 %v182
        %1750 = vmatprep.subr.mxu0 0.0
        %1751 = vmatpush1.msra.mxu0 %v183
        %1752 = vmatprep.subr.mxu0 0.0
        %1753 = vmatpush1.msra.mxu0 %v184
        %1754 = vmatprep.subr.mxu0 0.0
        %1755 = vmatpush1.msra.mxu0 %v185
        %1756 = vmatprep.subr.mxu0 0.0
        %1757 = vmatpush1.msra.mxu0 %v186
        %1758 = vmatprep.subr.mxu0 0.0
        %1759 = vmatpush1.msra.mxu0 %v187
        %1760 = vmatprep.subr.mxu0 0.0
        %1761 = vmatpush1.msra.mxu0 %v188
        %1762 = vmatprep.subr.mxu0 0.0
        %1763 = vmatpush1.msra.mxu0 %v189
        %1764 = vmatprep.subr.mxu0 0.0
        %1765 = vmatpush1.msra.mxu0 %v190
        %1766 = vmatprep.subr.mxu0 0.0
        %1767 = vmatpush1.msra.mxu0 %v191
        %1768 = vmatprep.subr.mxu0 0.0
        %1769 = vmatpush1.msra.mxu0 %v192
        %1770 = vmatprep.subr.mxu0 0.0
        %1771 = vmatpush1.msra.mxu0 %v193
        %1772 = vmatprep.subr.mxu0 0.0
        %1773 = vmatpush1.msra.mxu0 %v194
        %1774 = vmatprep.subr.mxu0 0.0
        %1775 = vmatpush1.msra.mxu0 %v195
        %1776 = vmatprep.subr.mxu0 0.0
        %1777 = vmatpush1.msra.mxu0 %v196
        %1778 = vmatprep.subr.mxu0 0.0
        %1779 = vmatpush1.msra.mxu0 %v197
        %1780 = vmatprep.subr.mxu0 0.0
        %1781 = vmatpush1.msra.mxu0 %v198
        %1782 = vmatprep.mubr.f32.mxu0 %v1695
        %1783 = vmatmul.mubr.f32.gmra.mrb[0].mxu0 %v1694
        %v1784 = vpop.f32.mrb[0].mxu0
        %v1785 = vadd.f32 0.0, %v1784
        %v1786 = vpop.f32.mrb[0].mxu0
        %1787 = vmatprep.mubr.f32.mxu0 %v1698
        %1788 = vmatmul.mubr.f32.gmra.mrb[0].mxu0 %v1697
        %v1789 = vpop.f32.mrb[0].mxu0
        %v1790 = vadd.f32 0.0, %v1789
        %v1791 = vpop.f32.mrb[0].mxu0
        %1792 = vmatprep.mubr.f32.mxu0 %v1701
        %1793 = vmatmul.mubr.f32.gmra.mrb[0].mxu0 %v1700
        %v1794 = vpop.f32.mrb[0].mxu0
        %v1795 = vadd.f32 0.0, %v1794
        %v1796 = vpop.f32.mrb[0].mxu0
        %1797 = vmatprep.mubr.f32.mxu0 %v1704
        %1798 = vmatmul.mubr.f32.gmra.mrb[0].mxu0 %v1703
        %v1799 = vpop.f32.mrb[0].mxu0
        %v1800 = vadd.f32 0.0, %v1799
        %v1801 = vpop.f32.mrb[0].mxu0
        %1802 = vmatprep.mubr.f32.mxu0 %v1707
        %1803 = vmatmul.mubr.f32.gmra.mrb[0].mxu0 %v1706
        %v1804 = vpop.f32.mrb[0].mxu0
        %v1805 = vadd.f32 0.0, %v1804
        %v1806 = vpop.f32.mrb[0].mxu0
        %1807 = vmatprep.mubr.f32.mxu0 %v1710
        %1808 = vmatmul.mubr.f32.gmra.mrb[0].mxu0 %v1709
        %v1809 = vpop.f32.mrb[0].mxu0
        %v1810 = vadd.f32 0.0, %v1809
        %v1811 = vpop.f32.mrb[0].mxu0
        %1812 = vmatprep.mubr.f32.mxu0 %v1713
        %1813 = vmatmul.mubr.f32.gmra.mrb[0].mxu0 %v1712
        %v1814 = vpop.f32.mrb[0].mxu0
        %v1815 = vadd.f32 0.0, %v1814
        %v1816 = vpop.f32.mrb[0].mxu0
        %1817 = vmatprep.mubr.f32.mxu0 %v1716
        %1818 = vmatmul.mubr.f32.gmra.mrb[0].mxu0 %v1715
        %v1819 = vpop.f32.mrb[0].mxu0
        %v1820 = vadd.f32 0.0, %v1819
        %v1821 = vpop.f32.mrb[0].mxu0
        %1822 = vdwg.mxu0
        %1823 = vmatprep.subr.mxu0 0.0
        %1824 = vmatpush1.msra.mxu0 %v199
        %1825 = vmatprep.subr.mxu0 0.0
        %1826 = vmatpush1.msra.mxu0 %v200
        %1827 = vmatprep.subr.mxu0 0.0
        %1828 = vmatpush1.msra.mxu0 %v201
        %1829 = vmatprep.subr.mxu0 0.0
        %1830 = vmatpush1.msra.mxu0 %v202
        %1831 = vmatprep.subr.mxu0 0.0
        %1832 = vmatpush1.msra.mxu0 %v203
        %1833 = vmatprep.subr.mxu0 0.0
        %1834 = vmatpush1.msra.mxu0 %v204
        %1835 = vmatprep.subr.mxu0 0.0
        %1836 = vmatpush1.msra.mxu0 %v205
        %1837 = vmatprep.subr.mxu0 0.0
        %1838 = vmatpush1.msra.mxu0 %v206
        %1839 = vmatprep.subr.mxu0 0.0
        %1840 = vmatpush1.msra.mxu0 %v207
        %1841 = vmatprep.subr.mxu0 0.0
        %1842 = vmatpush1.msra.mxu0 %v208
        %1843 = vmatprep.subr.mxu0 0.0
        %1844 = vmatpush1.msra.mxu0 %v209
        %1845 = vmatprep.subr.mxu0 0.0
        %1846 = vmatpush1.msra.mxu0 %v210
        %1847 = vmatprep.subr.mxu0 0.0
        %1848 = vmatpush1.msra.mxu0 %v211
        %1849 = vmatprep.subr.mxu0 0.0
        %1850 = vmatpush1.msra.mxu0 %v212
        %1851 = vmatprep.subr.mxu0 0.0
        %1852 = vmatpush1.msra.mxu0 %v213
        %1853 = vmatprep.subr.mxu0 0.0
        %1854 = vmatpush1.msra.mxu0 %v214
        %1855 = vmatprep.subr.mxu0 0.0
        %1856 = vmatpush1.msra.mxu0 0.0
        %1857 = vmatprep.subr.mxu0 0.0
        %1858 = vmatpush1.msra.mxu0 0.0
        %1859 = vmatprep.subr.mxu0 0.0
        %1860 = vmatpush1.msra.mxu0 0.0
        %1861 = vmatprep.subr.mxu0 0.0
        %1862 = vmatpush1.msra.mxu0 0.0
        %1863 = vmatprep.subr.mxu0 0.0
        %1864 = vmatpush1.msra.mxu0 0.0
        %1865 = vmatprep.subr.mxu0 0.0
        %1866 = vmatpush1.msra.mxu0 0.0
        %1867 = vmatprep.subr.mxu0 0.0
        %1868 = vmatpush1.msra.mxu0 0.0
        %1869 = vmatprep.subr.mxu0 0.0
        %1870 = vmatpush1.msra.mxu0 0.0
        %1871 = vmatprep.subr.mxu0 0.0
        %1872 = vmatpush1.msra.mxu0 0.0
        %1873 = vmatprep.subr.mxu0 0.0
        %1874 = vmatpush1.msra.mxu0 0.0
        %1875 = vmatprep.subr.mxu0 0.0
        %1876 = vmatpush1.msra.mxu0 0.0
        %1877 = vmatprep.subr.mxu0 0.0
        %1878 = vmatpush1.msra.mxu0 0.0
        %1879 = vmatprep.subr.mxu0 0.0
        %1880 = vmatpush1.msra.mxu0 0.0
        %1881 = vmatprep.subr.mxu0 0.0
        %1882 = vmatpush1.msra.mxu0 0.0
        %1883 = vmatprep.subr.mxu0 0.0
        %1884 = vmatpush1.msra.mxu0 0.0
        %1885 = vmatprep.subr.mxu0 0.0
        %1886 = vmatpush1.msra.mxu0 0.0
        %1887 = vmatprep.mubr.f32.mxu0 0.0
        %1888 = vmatmul.mubr.f32.gmra.mrb[0].mxu0 %v1696
        %v1889 = vpop.f32.mrb[0].mxu0
        %v1890 = vadd.f32 %v1785, %v1889
        %v1891 = vpop.f32.mrb[0].mxu0
        %1892 = vmatprep.mubr.f32.mxu0 0.0
        %1893 = vmatmul.mubr.f32.gmra.mrb[0].mxu0 %v1699
        %v1894 = vpop.f32.mrb[0].mxu0
        %v1895 = vadd.f32 %v1790, %v1894
        %v1896 = vpop.f32.mrb[0].mxu0
        %1897 = vmatprep.mubr.f32.mxu0 0.0
        %1898 = vmatmul.mubr.f32.gmra.mrb[0].mxu0 %v1702
        %v1899 = vpop.f32.mrb[0].mxu0
        %v1900 = vadd.f32 %v1795, %v1899
        %v1901 = vpop.f32.mrb[0].mxu0
        %1902 = vmatprep.mubr.f32.mxu0 0.0
        %1903 = vmatmul.mubr.f32.gmra.mrb[0].mxu0 %v1705
        %v1904 = vpop.f32.mrb[0].mxu0
        %v1905 = vadd.f32 %v1800, %v1904
        %v1906 = vpop.f32.mrb[0].mxu0
        %1907 = vmatprep.mubr.f32.mxu0 0.0
        %1908 = vmatmul.mubr.f32.gmra.mrb[0].mxu0 %v1708
        %v1909 = vpop.f32.mrb[0].mxu0
        %v1910 = vadd.f32 %v1805, %v1909
        %v1911 = vpop.f32.mrb[0].mxu0
        %1912 = vmatprep.mubr.f32.mxu0 0.0
        %1913 = vmatmul.mubr.f32.gmra.mrb[0].mxu0 %v1711
        %v1914 = vpop.f32.mrb[0].mxu0
        %v1915 = vadd.f32 %v1810, %v1914
        %v1916 = vpop.f32.mrb[0].mxu0
        %1917 = vmatprep.mubr.f32.mxu0 0.0
        %1918 = vmatmul.mubr.f32.gmra.mrb[0].mxu0 %v1714
        %v1919 = vpop.f32.mrb[0].mxu0
        %v1920 = vadd.f32 %v1815, %v1919
        %v1921 = vpop.f32.mrb[0].mxu0
        %1922 = vmatprep.mubr.f32.mxu0 0.0
        %1923 = vmatmul.mubr.f32.gmra.mrb[0].mxu0 %v1717
        %v1924 = vpop.f32.mrb[0].mxu0
        %v1925 = vadd.f32 %v1820, %v1924
        %v1926 = vpop.f32.mrb[0].mxu0
        %1927 = vdwg.mxu0
        %s1928 = scalar_lea.vmem %s165, 384
        %1929 = vst.msk [vmem:[%s1928] sm:$0xff] %vm452, %v1890
        %1930 = vst.msk [vmem:[%s1928 + $0x8] sm:$0xff] %vm452, %v1895
        %1931 = vst.msk [vmem:[%s1928 + $0x10] sm:$0xff] %vm452, %v1900
        %1932 = vst.msk [vmem:[%s1928 + $0x18] sm:$0xff] %vm452, %v1905
        %1933 = vst.msk [vmem:[%s1928 + $0x20] sm:$0xff] %vm452, %v1910
        %1934 = vst.msk [vmem:[%s1928 + $0x28] sm:$0xff] %vm452, %v1915
        %1935 = vst.msk [vmem:[%s1928 + $0x30] sm:$0xff] %vm452, %v1920
        %1936 = vst.msk [vmem:[%s1928 + $0x38] sm:$0xff] %vm452, %v1925
        %s1937 = smul.u32 56, 3
        %s1938 = smul.addr %s1937, 8
        %s1939 = scalar_lea.vmem %s139, %s1938 [#allocation2]
        %v1940 = vld [vmem:[%s1939] sm:$0xff]
        %v1941 = vld [vmem:[%s1939 + $0x8] sm:$0xff]
        %v1942 = vld [vmem:[%s1939 + $0x10] sm:$0xff]
        %v1943 = vld [vmem:[%s1939 + $0x18] sm:$0xff]
        %v1944 = vld [vmem:[%s1939 + $0x20] sm:$0xff]
        %v1945 = vld [vmem:[%s1939 + $0x28] sm:$0xff]
        %v1946 = vld [vmem:[%s1939 + $0x30] sm:$0xff]
        %v1947 = vld [vmem:[%s1939 + $0x38] sm:$0xff]
        %v1948 = vld [vmem:[%s1939 + $0x40] sm:$0xff]
        %v1949 = vld [vmem:[%s1939 + $0x48] sm:$0xff]
        %v1950 = vld [vmem:[%s1939 + $0x50] sm:$0xff]
        %v1951 = vld [vmem:[%s1939 + $0x58] sm:$0xff]
        %v1952 = vld [vmem:[%s1939 + $0x60] sm:$0xff]
        %v1953 = vld [vmem:[%s1939 + $0x68] sm:$0xff]
        %v1954 = vld [vmem:[%s1939 + $0x70] sm:$0xff]
        %v1955 = vld [vmem:[%s1939 + $0x78] sm:$0xff]
        %v1956 = vld [vmem:[%s1939 + $0x80] sm:$0xff]
        %v1957 = vld [vmem:[%s1939 + $0x88] sm:$0xff]
        %v1958 = vld [vmem:[%s1939 + $0x90] sm:$0xff]
        %v1959 = vld [vmem:[%s1939 + $0x98] sm:$0xff]
        %v1960 = vld [vmem:[%s1939 + $0xa0] sm:$0xff]
        %v1961 = vld [vmem:[%s1939 + $0xa8] sm:$0xff]
        %v1962 = vld [vmem:[%s1939 + $0xb0] sm:$0xff]
        %v1963 = vld [vmem:[%s1939 + $0xb8] sm:$0xff]
        %1964 = vmatprep.subr.mxu0 0.0
        %1965 = vmatpush1.msra.mxu0 %v167
        %1966 = vmatprep.subr.mxu0 0.0
        %1967 = vmatpush1.msra.mxu0 %v168
        %1968 = vmatprep.subr.mxu0 0.0
        %1969 = vmatpush1.msra.mxu0 %v169
        %1970 = vmatprep.subr.mxu0 0.0
        %1971 = vmatpush1.msra.mxu0 %v170
        %1972 = vmatprep.subr.mxu0 0.0
        %1973 = vmatpush1.msra.mxu0 %v171
        %1974 = vmatprep.subr.mxu0 0.0
        %1975 = vmatpush1.msra.mxu0 %v172
        %1976 = vmatprep.subr.mxu0 0.0
        %1977 = vmatpush1.msra.mxu0 %v173
        %1978 = vmatprep.subr.mxu0 0.0
        %1979 = vmatpush1.msra.mxu0 %v174
        %1980 = vmatprep.subr.mxu0 0.0
        %1981 = vmatpush1.msra.mxu0 %v175
        %1982 = vmatprep.subr.mxu0 0.0
        %1983 = vmatpush1.msra.mxu0 %v176
        %1984 = vmatprep.subr.mxu0 0.0
        %1985 = vmatpush1.msra.mxu0 %v177
        %1986 = vmatprep.subr.mxu0 0.0
        %1987 = vmatpush1.msra.mxu0 %v178
        %1988 = vmatprep.subr.mxu0 0.0
        %1989 = vmatpush1.msra.mxu0 %v179
        %1990 = vmatprep.subr.mxu0 0.0
        %1991 = vmatpush1.msra.mxu0 %v180
        %1992 = vmatprep.subr.mxu0 0.0
        %1993 = vmatpush1.msra.mxu0 %v181
        %1994 = vmatprep.subr.mxu0 0.0
        %1995 = vmatpush1.msra.mxu0 %v182
        %1996 = vmatprep.subr.mxu0 0.0
        %1997 = vmatpush1.msra.mxu0 %v183
        %1998 = vmatprep.subr.mxu0 0.0
        %1999 = vmatpush1.msra.mxu0 %v184
        %2000 = vmatprep.subr.mxu0 0.0
        %2001 = vmatpush1.msra.mxu0 %v185
        %2002 = vmatprep.subr.mxu0 0.0
        %2003 = vmatpush1.msra.mxu0 %v186
        %2004 = vmatprep.subr.mxu0 0.0
        %2005 = vmatpush1.msra.mxu0 %v187
        %2006 = vmatprep.subr.mxu0 0.0
        %2007 = vmatpush1.msra.mxu0 %v188
        %2008 = vmatprep.subr.mxu0 0.0
        %2009 = vmatpush1.msra.mxu0 %v189
        %2010 = vmatprep.subr.mxu0 0.0
        %2011 = vmatpush1.msra.mxu0 %v190
        %2012 = vmatprep.subr.mxu0 0.0
        %2013 = vmatpush1.msra.mxu0 %v191
        %2014 = vmatprep.subr.mxu0 0.0
        %2015 = vmatpush1.msra.mxu0 %v192
        %2016 = vmatprep.subr.mxu0 0.0
        %2017 = vmatpush1.msra.mxu0 %v193
        %2018 = vmatprep.subr.mxu0 0.0
        %2019 = vmatpush1.msra.mxu0 %v194
        %2020 = vmatprep.subr.mxu0 0.0
        %2021 = vmatpush1.msra.mxu0 %v195
        %2022 = vmatprep.subr.mxu0 0.0
        %2023 = vmatpush1.msra.mxu0 %v196
        %2024 = vmatprep.subr.mxu0 0.0
        %2025 = vmatpush1.msra.mxu0 %v197
        %2026 = vmatprep.subr.mxu0 0.0
        %2027 = vmatpush1.msra.mxu0 %v198
        %2028 = vmatprep.mubr.f32.mxu0 %v1941
        %2029 = vmatmul.mubr.f32.gmra.mrb[0].mxu0 %v1940
        %v2030 = vpop.f32.mrb[0].mxu0
        %v2031 = vadd.f32 0.0, %v2030
        %v2032 = vpop.f32.mrb[0].mxu0
        %2033 = vmatprep.mubr.f32.mxu0 %v1944
        %2034 = vmatmul.mubr.f32.gmra.mrb[0].mxu0 %v1943
        %v2035 = vpop.f32.mrb[0].mxu0
        %v2036 = vadd.f32 0.0, %v2035
        %v2037 = vpop.f32.mrb[0].mxu0
        %2038 = vmatprep.mubr.f32.mxu0 %v1947
        %2039 = vmatmul.mubr.f32.gmra.mrb[0].mxu0 %v1946
        %v2040 = vpop.f32.mrb[0].mxu0
        %v2041 = vadd.f32 0.0, %v2040
        %v2042 = vpop.f32.mrb[0].mxu0
        %2043 = vmatprep.mubr.f32.mxu0 %v1950
        %2044 = vmatmul.mubr.f32.gmra.mrb[0].mxu0 %v1949
        %v2045 = vpop.f32.mrb[0].mxu0
        %v2046 = vadd.f32 0.0, %v2045
        %v2047 = vpop.f32.mrb[0].mxu0
        %2048 = vmatprep.mubr.f32.mxu0 %v1953
        %2049 = vmatmul.mubr.f32.gmra.mrb[0].mxu0 %v1952
        %v2050 = vpop.f32.mrb[0].mxu0
        %v2051 = vadd.f32 0.0, %v2050
        %v2052 = vpop.f32.mrb[0].mxu0
        %2053 = vmatprep.mubr.f32.mxu0 %v1956
        %2054 = vmatmul.mubr.f32.gmra.mrb[0].mxu0 %v1955
        %v2055 = vpop.f32.mrb[0].mxu0
        %v2056 = vadd.f32 0.0, %v2055
        %v2057 = vpop.f32.mrb[0].mxu0
        %2058 = vmatprep.mubr.f32.mxu0 %v1959
        %2059 = vmatmul.mubr.f32.gmra.mrb[0].mxu0 %v1958
        %v2060 = vpop.f32.mrb[0].mxu0
        %v2061 = vadd.f32 0.0, %v2060
        %v2062 = vpop.f32.mrb[0].mxu0
        %2063 = vmatprep.mubr.f32.mxu0 %v1962
        %2064 = vmatmul.mubr.f32.gmra.mrb[0].mxu0 %v1961
        %v2065 = vpop.f32.mrb[0].mxu0
        %v2066 = vadd.f32 0.0, %v2065
        %v2067 = vpop.f32.mrb[0].mxu0
        %2068 = vdwg.mxu0
        %2069 = vmatprep.subr.mxu0 0.0
        %2070 = vmatpush1.msra.mxu0 %v199
        %2071 = vmatprep.subr.mxu0 0.0
        %2072 = vmatpush1.msra.mxu0 %v200
        %2073 = vmatprep.subr.mxu0 0.0
        %2074 = vmatpush1.msra.mxu0 %v201
        %2075 = vmatprep.subr.mxu0 0.0
        %2076 = vmatpush1.msra.mxu0 %v202
        %2077 = vmatprep.subr.mxu0 0.0
        %2078 = vmatpush1.msra.mxu0 %v203
        %2079 = vmatprep.subr.mxu0 0.0
        %2080 = vmatpush1.msra.mxu0 %v204
        %2081 = vmatprep.subr.mxu0 0.0
        %2082 = vmatpush1.msra.mxu0 %v205
        %2083 = vmatprep.subr.mxu0 0.0
        %2084 = vmatpush1.msra.mxu0 %v206
        %2085 = vmatprep.subr.mxu0 0.0
        %2086 = vmatpush1.msra.mxu0 %v207
        %2087 = vmatprep.subr.mxu0 0.0
        %2088 = vmatpush1.msra.mxu0 %v208
        %2089 = vmatprep.subr.mxu0 0.0
        %2090 = vmatpush1.msra.mxu0 %v209
        %2091 = vmatprep.subr.mxu0 0.0
        %2092 = vmatpush1.msra.mxu0 %v210
        %2093 = vmatprep.subr.mxu0 0.0
        %2094 = vmatpush1.msra.mxu0 %v211
        %2095 = vmatprep.subr.mxu0 0.0
        %2096 = vmatpush1.msra.mxu0 %v212
        %2097 = vmatprep.subr.mxu0 0.0
        %2098 = vmatpush1.msra.mxu0 %v213
        %2099 = vmatprep.subr.mxu0 0.0
        %2100 = vmatpush1.msra.mxu0 %v214
        %2101 = vmatprep.subr.mxu0 0.0
        %2102 = vmatpush1.msra.mxu0 0.0
        %2103 = vmatprep.subr.mxu0 0.0
        %2104 = vmatpush1.msra.mxu0 0.0
        %2105 = vmatprep.subr.mxu0 0.0
        %2106 = vmatpush1.msra.mxu0 0.0
        %2107 = vmatprep.subr.mxu0 0.0
        %2108 = vmatpush1.msra.mxu0 0.0
        %2109 = vmatprep.subr.mxu0 0.0
        %2110 = vmatpush1.msra.mxu0 0.0
        %2111 = vmatprep.subr.mxu0 0.0
        %2112 = vmatpush1.msra.mxu0 0.0
        %2113 = vmatprep.subr.mxu0 0.0
        %2114 = vmatpush1.msra.mxu0 0.0
        %2115 = vmatprep.subr.mxu0 0.0
        %2116 = vmatpush1.msra.mxu0 0.0
        %2117 = vmatprep.subr.mxu0 0.0
        %2118 = vmatpush1.msra.mxu0 0.0
        %2119 = vmatprep.subr.mxu0 0.0
        %2120 = vmatpush1.msra.mxu0 0.0
        %2121 = vmatprep.subr.mxu0 0.0
        %2122 = vmatpush1.msra.mxu0 0.0
        %2123 = vmatprep.subr.mxu0 0.0
        %2124 = vmatpush1.msra.mxu0 0.0
        %2125 = vmatprep.subr.mxu0 0.0
        %2126 = vmatpush1.msra.mxu0 0.0
        %2127 = vmatprep.subr.mxu0 0.0
        %2128 = vmatpush1.msra.mxu0 0.0
        %2129 = vmatprep.subr.mxu0 0.0
        %2130 = vmatpush1.msra.mxu0 0.0
        %2131 = vmatprep.subr.mxu0 0.0
        %2132 = vmatpush1.msra.mxu0 0.0
        %2133 = vmatprep.mubr.f32.mxu0 0.0
        %2134 = vmatmul.mubr.f32.gmra.mrb[0].mxu0 %v1942
        %v2135 = vpop.f32.mrb[0].mxu0
        %v2136 = vadd.f32 %v2031, %v2135
        %v2137 = vpop.f32.mrb[0].mxu0
        %2138 = vmatprep.mubr.f32.mxu0 0.0
        %2139 = vmatmul.mubr.f32.gmra.mrb[0].mxu0 %v1945
        %v2140 = vpop.f32.mrb[0].mxu0
        %v2141 = vadd.f32 %v2036, %v2140
        %v2142 = vpop.f32.mrb[0].mxu0
        %2143 = vmatprep.mubr.f32.mxu0 0.0
        %2144 = vmatmul.mubr.f32.gmra.mrb[0].mxu0 %v1948
        %v2145 = vpop.f32.mrb[0].mxu0
        %v2146 = vadd.f32 %v2041, %v2145
        %v2147 = vpop.f32.mrb[0].mxu0
        %2148 = vmatprep.mubr.f32.mxu0 0.0
        %2149 = vmatmul.mubr.f32.gmra.mrb[0].mxu0 %v1951
        %v2150 = vpop.f32.mrb[0].mxu0
        %v2151 = vadd.f32 %v2046, %v2150
        %v2152 = vpop.f32.mrb[0].mxu0
        %2153 = vmatprep.mubr.f32.mxu0 0.0
        %2154 = vmatmul.mubr.f32.gmra.mrb[0].mxu0 %v1954
        %v2155 = vpop.f32.mrb[0].mxu0
        %v2156 = vadd.f32 %v2051, %v2155
        %v2157 = vpop.f32.mrb[0].mxu0
        %2158 = vmatprep.mubr.f32.mxu0 0.0
        %2159 = vmatmul.mubr.f32.gmra.mrb[0].mxu0 %v1957
        %v2160 = vpop.f32.mrb[0].mxu0
        %v2161 = vadd.f32 %v2056, %v2160
        %v2162 = vpop.f32.mrb[0].mxu0
        %2163 = vmatprep.mubr.f32.mxu0 0.0
        %2164 = vmatmul.mubr.f32.gmra.mrb[0].mxu0 %v1960
        %v2165 = vpop.f32.mrb[0].mxu0
        %v2166 = vadd.f32 %v2061, %v2165
        %v2167 = vpop.f32.mrb[0].mxu0
        %2168 = vmatprep.mubr.f32.mxu0 0.0
        %2169 = vmatmul.mubr.f32.gmra.mrb[0].mxu0 %v1963
        %v2170 = vpop.f32.mrb[0].mxu0
        %v2171 = vadd.f32 %v2066, %v2170
        %v2172 = vpop.f32.mrb[0].mxu0
        %2173 = vdwg.mxu0
        %s2174 = scalar_lea.vmem %s165, 448
        %2175 = vst.msk [vmem:[%s2174] sm:$0xff] %vm452, %v2136
        %2176 = vst.msk [vmem:[%s2174 + $0x8] sm:$0xff] %vm452, %v2141
        %2177 = vst.msk [vmem:[%s2174 + $0x10] sm:$0xff] %vm452, %v2146
        %2178 = vst.msk [vmem:[%s2174 + $0x18] sm:$0xff] %vm452, %v2151
        %2179 = vst.msk [vmem:[%s2174 + $0x20] sm:$0xff] %vm452, %v2156
        %2180 = vst.msk [vmem:[%s2174 + $0x28] sm:$0xff] %vm452, %v2161
        %2181 = vst.msk [vmem:[%s2174 + $0x30] sm:$0xff] %vm452, %v2166
        %2182 = vst.msk [vmem:[%s2174 + $0x38] sm:$0xff] %vm452, %v2171
        %s2183 = smul.u32 64, %s16
        %p2184 = scmp.lt.s32.totalorder %s2183, 127
        %s2185 = scalar_select %p2184, %s2183, 127
        %s2186 = smul.addr %s2185, 8
        %s2187 = scalar_lea.vmem %s2, %s2186
        // Predicated region
        $region33: #{tpu_custom_call.1} parent=27 // pred_check
          %p2188 = pneg %p81
        $region34: #{tpu_custom_call.1} parent=27 // pred_check_branch
          %2190 = sbr.rel (%p2188) target = $region36
        $region35: #{tpu_custom_call.1} parent=27 // pred_region
          %s2191 = smul.u32 64, %s16
        $region36: #{tpu_custom_call.1} parent=27 // pred_fallthru
          _
      $region28: #{tpu_custom_call.1} parent=5 // pred_fallthru
        _
      %p2192 = scmp.le.s32.totalorder 2, %s11
      // Predicated region
      $region37: #{tpu_custom_call.1} parent=5 // pred_check
        %p2193 = pneg %p2192
      $region38: #{tpu_custom_call.1} parent=5 // pred_check_branch
        %2195 = sbr.rel (%p2193) target = $region40
      $region39: #{tpu_custom_call.1} parent=5 // pred_region
        %s2196 = ssub.s32 %s11, 2
        // Predicated region
        $region41: #{tpu_custom_call.1} parent=39 // pred_check
          %p2197 = pneg %p87
        $region42: #{tpu_custom_call.1} parent=39 // pred_check_branch
          %2199 = sbr.rel (%p2197) target = $region44
        $region43: #{tpu_custom_call.1} parent=39 // pred_region
          %s2200 = smul.u32 64, %s17
          %p2201 = scmp.lt.s32.totalorder %s2200, 127
          %s2202 = scalar_select %p2201, %s2200, 127
          %s2203 = smul.addr %s2202, 8
          %s2204 = scalar_lea.vmem %s2, %s2203
        $region44: #{tpu_custom_call.1} parent=39 // pred_fallthru
          _
      $region40: #{tpu_custom_call.1} parent=5 // pred_fallthru
        _
    $region6: #{tpu_custom_call.1} parent=1 // loop_footer
      %s15 = sadd.s32 1, %s11
    $region7: #{tpu_custom_call.1} parent=1 // loop_footer_branch
      %10 = sbr.rel target = $region3
    $region8: #{tpu_custom_call.1} parent=1 // loop_exit
      _
    %2205 = vsyncpa [#allocation3], 1
    %s2206 = scalar_lea.sflag [#allocation3], 1
    %2207 = vsyncpa %s2206, 1

</llo_original>
